<compile_context>
chip_gen: v6e
topology: v6e:2x2x1
jax: 0.10.0
libtpu: 0.0.40
codegen_flags: <defaults>
</compile_context>

<pallas_src>
import functools

import jax
import jax.numpy as jnp
from jax import lax
from jax.experimental import pallas as pl
from jax.experimental.pallas import tpu as pltpu

_LANE = 128
_NEG_INF = -1e30


def _round_up(v, m):
    return ((v + m - 1) // m) * m


def _ckaformer_kernel(x_ref, w1_ref, b1_ref, w2_ref, b2_ref, out_ref,
                      *, depth: int, gamma: float):
    """Full CKAFormer forward (operands already lane-padded to 128).

    x_ref  : [N, Dp]   f32  (feature dim zero-padded)
    w1_ref : [Dp, Hp]  f32  (first Linear, pre-transposed, zero-padded)
    b1_ref : [1, Hp]   f32  (zero-padded)
    w2_ref : [Hp, Op]  f32  (second Linear, pre-transposed, zero-padded)
    b2_ref : [1, Op]   f32  (padded logit columns biased to -1e30 so the
                             softmax assigns them exactly zero probability)
    out_ref: [N, Op]   f32  (padded logits; caller slices [:, :out_dim])
    """
    n = x_ref.shape[0]
    w1 = w1_ref[...]
    w2 = w2_ref[...]
    # Hoist bias broadcasts out of the unrolled depth loop (JAX does not CSE
    # broadcast_in_dim; lcls is called depth+1 times).
    b1 = jnp.broadcast_to(b1_ref[...], (n, w1.shape[1]))
    b2 = jnp.broadcast_to(b2_ref[...], (n, w2.shape[1]))

    def lcls(v):
        # FeedForwardClassifier: Linear(dim,16) -> ReLU -> Linear(16,out_dim).
        # Kept f32: it produces the final logits and the matmuls are tiny.
        h = jnp.dot(v, w1, preferred_element_type=jnp.float32) + b1
        h = jnp.maximum(h, 0.0)
        return jnp.dot(h, w2, preferred_element_type=jnp.float32) + b2

    x = x_ref[...]

    # Static unroll over the (small) depth.
    for _ in range(depth):
        # LayerNorm module: X / ||X||_2 along last dim (rsqrt -> EUP).
        inv_nrm = lax.rsqrt(jnp.sum(x * x, axis=-1, keepdims=True) + 1e-12)
        x = x * inv_nrm

        # CompressionAnnilation: P = softmax(lcls(X)).
        logits = lcls(x)
        logits = logits - jnp.max(logits, axis=-1, keepdims=True)
        e = jnp.exp(logits)
        p = e * pl.reciprocal(jnp.sum(e, axis=-1, keepdims=True), approx=True)

        # X + gamma * P @ (P.T @ X) - gamma * X @ (X.T @ X)
        # Re-associated so the inner grams are [Op,Dp] / [Dp,Dp] (never [N,N]);
        # the transposes are folded into the MXU contraction (contract dim 0).
        # bf16 operands, f32 accumulation; result is gamma-scaled.
        x_bf = x.astype(jnp.bfloat16)
        p_bf = p.astype(jnp.bfloat16)
        gx = lax.dot_general(x_bf, x_bf, (((0,), (0,)), ((), ())),
                             preferred_element_type=jnp.float32)   # X.T @ X
        gp = lax.dot_general(p_bf, x_bf, (((0,), (0,)), ((), ())),
                             preferred_element_type=jnp.float32)   # P.T @ X
        x = (x
             + gamma * jnp.dot(p_bf, gp.astype(jnp.bfloat16),
                               preferred_element_type=jnp.float32)
             - gamma * jnp.dot(x_bf, gx.astype(jnp.bfloat16),
                               preferred_element_type=jnp.float32))

    # Final classifier; Op is a multiple of 128 -> unmasked lane-dense store.
    out_ref[...] = lcls(x)


def ckaformer_forward(x, w1, b1, w2, b2, *, depth: int, gamma: float = 1e-4):
    """Wrapper calling the Pallas kernel. Returns (logits, stats)."""
    n, dim = x.shape
    hidden = w1.shape[1]
    out_dim = w2.shape[1]

    dp = _round_up(dim, _LANE)
    hp = _round_up(hidden, _LANE)
    op = _round_up(out_dim, _LANE)

    # Lane-pad every last dim to a multiple of 128. Zero padding is exact:
    # padded X columns stay exactly zero through norm / grams / residual, and
    # padded logit columns are pinned to -1e30 so softmax gives them weight 0.
    x_p = jnp.pad(x, ((0, 0), (0, dp - dim)))
    w1_p = jnp.pad(w1, ((0, dp - dim), (0, hp - hidden)))
    b1_p = jnp.pad(b1.reshape(1, -1), ((0, 0), (0, hp - hidden)))
    w2_p = jnp.pad(w2, ((0, hp - hidden), (0, op - out_dim)))
    b2_p = jnp.pad(b2.reshape(1, -1), ((0, 0), (0, op - out_dim)),
                   constant_values=_NEG_INF)

    kernel = functools.partial(_ckaformer_kernel, depth=depth, gamma=gamma)

    # Residency: I/O + activations + the two small grams (single-buffered,
    # no grid). Sized explicitly so growth never silently hits the scoped
    # VMEM defaults (16/32/32 MiB on v5e/v6e/v7x).
    resident_bytes = 4 * (n * dp + dp * hp + hp + hp * op + op + n * op   # I/O
                          + 3 * n * dp + 2 * n * hp + 2 * n * op          # acts
                          + dp * dp + op * dp)                            # grams
    vmem_limit = int(min(64 * 1024 * 1024,
                         max(4 * 1024 * 1024, 4 * resident_bytes)))

    cls_flops = 2 * n * dp * hp + 2 * n * hp * op
    layer_flops = cls_flops + 4 * n * dp * dp + 4 * n * op * dp
    cost = pl.CostEstimate(
        flops=int(depth * layer_flops + cls_flops),
        transcendentals=int(depth * n * (op + 2)),
        bytes_accessed=int(4 * (n * dp + dp * hp + hp + hp * op + op + n * op)),
    )

    vmem = pltpu.MemorySpace.VMEM
    padded = pl.pallas_call(
        kernel,
        out_shape=jax.ShapeDtypeStruct((n, op), jnp.float32),
        in_specs=[pl.BlockSpec(memory_space=vmem)] * 5,
        out_specs=pl.BlockSpec(memory_space=vmem),
        compiler_params=pltpu.CompilerParams(vmem_limit_bytes=vmem_limit),
        cost_estimate=cost,
    )(x_p, w1_p, b1_p, w2_p, b2_p)

    logits = padded[:, :out_dim]
    # stats are constants recorded per layer (pure Python glue, same as torch)
    stats = {"lc": [gamma] * depth, "rc": [gamma] * depth}
    return logits, stats


def _reference(x, w1, b1, w2, b2, depth, gamma):
    """Pure-JAX f32 reference of the PyTorch forward (original association)."""
    def lcls(v):
        h = jnp.maximum(v @ w1 + b1, 0.0)
        return h @ w2 + b2

    for _ in range(depth):
        x = x / jnp.linalg.norm(x, axis=-1, keepdims=True)
        p = jax.nn.softmax(lcls(x), axis=-1)
        x = x + gamma * (p @ p.T) @ x - gamma * (x @ x.T) @ x
    return lcls(x)


if __name__ == "__main__":
    # small shapes implied by the module: X is [seq, dim]
    N, DIM, HIDDEN, OUT_DIM, DEPTH = 8, 32, 16, 4, 3
    GAMMA = 1e-4

    key = jax.random.PRNGKey(0)
    kx, k1, k2, k3, k4 = jax.random.split(key, 5)

    x = jax.random.normal(kx, (N, DIM), dtype=jnp.float32)
    # deterministic "init" of the FeedForwardClassifier parameters
    w1 = jax.random.normal(k1, (DIM, HIDDEN), dtype=jnp.float32) * 0.1
    b1 = jax.random.normal(k2, (HIDDEN,), dtype=jnp.float32) * 0.01
    w2 = jax.random.normal(k3, (HIDDEN, OUT_DIM), dtype=jnp.float32) * 0.1
    b2 = jax.random.normal(k4, (OUT_DIM,), dtype=jnp.float32) * 0.01

    logits, stats = ckaformer_forward(x, w1, b1, w2, b2,
                                      depth=DEPTH, gamma=GAMMA)
    logits = jax.block_until_ready(logits)

    ref = _reference(x, w1, b1, w2, b2, DEPTH, GAMMA)
    # slightly looser tolerance than f32-exact: re-association + bf16 grams
    # + rsqrt/approx-reciprocal change low-order bits only.
    assert jnp.allclose(logits, ref, atol=1e-3, rtol=1e-3), "mismatch vs reference"
    assert len(stats["lc"]) == DEPTH and len(stats["rc"]) == DEPTH

    print("KERNEL_OK")
</pallas_src>

<mosaic_0001>
module attributes {stable_mosaic.version = 11 : i64} {
  func.func @_ckaformer_kernel(%arg0: memref<8x128xf32, #tpu.memory_space<vmem>>, %arg1: memref<128x128xf32, #tpu.memory_space<vmem>>, %arg2: memref<1x128xf32, #tpu.memory_space<vmem>>, %arg3: memref<128x128xf32, #tpu.memory_space<vmem>>, %arg4: memref<1x128xf32, #tpu.memory_space<vmem>>, %arg5: memref<8x128xf32, #tpu.memory_space<vmem>>) attributes {dimension_semantics = [], scalar_prefetch = 0 : i64, scratch_operands = 0 : i64, tpu.core_type = #tpu.core_type<tc>} {
    %c0 = arith.constant 0 : index
    %c0_0 = arith.constant 0 : index
    %0 = vector.load %arg1[%c0, %c0_0] : memref<128x128xf32, #tpu.memory_space<vmem>>, vector<128x128xf32>
    %c0_1 = arith.constant 0 : index
    %c0_2 = arith.constant 0 : index
    %1 = vector.load %arg3[%c0_1, %c0_2] : memref<128x128xf32, #tpu.memory_space<vmem>>, vector<128x128xf32>
    %c0_3 = arith.constant 0 : index
    %c0_4 = arith.constant 0 : index
    %2 = vector.load %arg2[%c0_3, %c0_4] : memref<1x128xf32, #tpu.memory_space<vmem>>, vector<1x128xf32>
    %3 = vector.shape_cast %2 : vector<1x128xf32> to vector<1x128xf32>
    %4 = vector.broadcast %3 : vector<1x128xf32> to vector<8x128xf32>
    %c0_5 = arith.constant 0 : index
    %c0_6 = arith.constant 0 : index
    %5 = vector.load %arg4[%c0_5, %c0_6] : memref<1x128xf32, #tpu.memory_space<vmem>>, vector<1x128xf32>
    %6 = vector.shape_cast %5 : vector<1x128xf32> to vector<1x128xf32>
    %7 = vector.broadcast %6 : vector<1x128xf32> to vector<8x128xf32>
    %c0_7 = arith.constant 0 : index
    %c0_8 = arith.constant 0 : index
    %8 = vector.load %arg0[%c0_7, %c0_8] : memref<8x128xf32, #tpu.memory_space<vmem>>, vector<8x128xf32>
    %9 = arith.mulf %8, %8 : vector<8x128xf32>
    %cst = arith.constant dense<0.000000e+00> : vector<8xf32>
    %10 = vector.multi_reduction <add>, %9, %cst [1] : vector<8x128xf32> to vector<8xf32>
    %11 = vector.shape_cast %10 : vector<8xf32> to vector<8x1xf32>
    %cst_9 = arith.constant 9.99999996E-13 : f32
    %12 = vector.broadcast %cst_9 : f32 to vector<8x1xf32>
    %13 = arith.addf %11, %12 : vector<8x1xf32>
    %14 = math.rsqrt %13 : vector<8x1xf32>
    %15 = vector.broadcast %14 : vector<8x1xf32> to vector<8x128xf32>
    %16 = arith.mulf %8, %15 : vector<8x128xf32>
    %cst_10 = arith.constant dense<0.000000e+00> : vector<8x128xf32>
    %17 = tpu.matmul %16, %0, %cst_10 {dimension_numbers = #tpu.dot_dimension_numbers<[1], [0], [0], [1], [0, 0, 1, 1], [], []>} : vector<8x128xf32>, vector<128x128xf32>, vector<8x128xf32> -> vector<8x128xf32>
    %18 = arith.addf %17, %4 : vector<8x128xf32>
    %cst_11 = arith.constant 0.000000e+00 : f32
    %19 = vector.broadcast %cst_11 : f32 to vector<8x128xf32>
    %20 = arith.maximumf %18, %19 : vector<8x128xf32>
    %cst_12 = arith.constant dense<0.000000e+00> : vector<8x128xf32>
    %21 = tpu.matmul %20, %1, %cst_12 {dimension_numbers = #tpu.dot_dimension_numbers<[1], [0], [0], [1], [0, 0, 1, 1], [], []>} : vector<8x128xf32>, vector<128x128xf32>, vector<8x128xf32> -> vector<8x128xf32>
    %22 = arith.addf %21, %7 : vector<8x128xf32>
    %cst_13 = arith.constant dense<0xFF800000> : vector<8xf32>
    %23 = vector.multi_reduction <maximumf>, %22, %cst_13 [1] : vector<8x128xf32> to vector<8xf32>
    %24 = vector.shape_cast %23 : vector<8xf32> to vector<8x1xf32>
    %25 = vector.broadcast %24 : vector<8x1xf32> to vector<8x128xf32>
    %26 = arith.subf %22, %25 : vector<8x128xf32>
    %27 = math.exp %26 : vector<8x128xf32>
    %cst_14 = arith.constant dense<0.000000e+00> : vector<8xf32>
    %28 = vector.multi_reduction <add>, %27, %cst_14 [1] : vector<8x128xf32> to vector<8xf32>
    %29 = vector.shape_cast %28 : vector<8xf32> to vector<8x1xf32>
    %30 = tpu.reciprocal %29 {approx = true} : vector<8x1xf32> -> vector<8x1xf32>
    %31 = vector.broadcast %30 : vector<8x1xf32> to vector<8x128xf32>
    %32 = arith.mulf %27, %31 : vector<8x128xf32>
    %33 = arith.truncf %16 : vector<8x128xf32> to vector<8x128xbf16>
    %34 = arith.truncf %32 : vector<8x128xf32> to vector<8x128xbf16>
    %cst_15 = arith.constant dense<0.000000e+00> : vector<128x128xf32>
    %35 = tpu.matmul %33, %33, %cst_15 {dimension_numbers = #tpu.dot_dimension_numbers<[0], [0], [1], [1], [0, 1, 1, 1], [], []>} : vector<8x128xbf16>, vector<8x128xbf16>, vector<128x128xf32> -> vector<128x128xf32>
    %cst_16 = arith.constant dense<0.000000e+00> : vector<128x128xf32>
    %36 = tpu.matmul %34, %33, %cst_16 {dimension_numbers = #tpu.dot_dimension_numbers<[0], [0], [1], [1], [0, 1, 1, 1], [], []>} : vector<8x128xbf16>, vector<8x128xbf16>, vector<128x128xf32> -> vector<128x128xf32>
    %37 = arith.truncf %36 : vector<128x128xf32> to vector<128x128xbf16>
    %cst_17 = arith.constant dense<0.000000e+00> : vector<8x128xf32>
    %38 = tpu.matmul %34, %37, %cst_17 {dimension_numbers = #tpu.dot_dimension_numbers<[1], [0], [0], [1], [0, 0, 1, 1], [], []>} : vector<8x128xbf16>, vector<128x128xbf16>, vector<8x128xf32> -> vector<8x128xf32>
    %cst_18 = arith.constant 9.99999974E-5 : f32
    %39 = vector.broadcast %cst_18 : f32 to vector<8x128xf32>
    %40 = arith.mulf %39, %38 : vector<8x128xf32>
    %41 = arith.addf %16, %40 : vector<8x128xf32>
    %42 = arith.truncf %35 : vector<128x128xf32> to vector<128x128xbf16>
    %cst_19 = arith.constant dense<0.000000e+00> : vector<8x128xf32>
    %43 = tpu.matmul %33, %42, %cst_19 {dimension_numbers = #tpu.dot_dimension_numbers<[1], [0], [0], [1], [0, 0, 1, 1], [], []>} : vector<8x128xbf16>, vector<128x128xbf16>, vector<8x128xf32> -> vector<8x128xf32>
    %cst_20 = arith.constant 9.99999974E-5 : f32
    %44 = vector.broadcast %cst_20 : f32 to vector<8x128xf32>
    %45 = arith.mulf %44, %43 : vector<8x128xf32>
    %46 = arith.subf %41, %45 : vector<8x128xf32>
    %47 = arith.mulf %46, %46 : vector<8x128xf32>
    %cst_21 = arith.constant dense<0.000000e+00> : vector<8xf32>
    %48 = vector.multi_reduction <add>, %47, %cst_21 [1] : vector<8x128xf32> to vector<8xf32>
    %49 = vector.shape_cast %48 : vector<8xf32> to vector<8x1xf32>
    %cst_22 = arith.constant 9.99999996E-13 : f32
    %50 = vector.broadcast %cst_22 : f32 to vector<8x1xf32>
    %51 = arith.addf %49, %50 : vector<8x1xf32>
    %52 = math.rsqrt %51 : vector<8x1xf32>
    %53 = vector.broadcast %52 : vector<8x1xf32> to vector<8x128xf32>
    %54 = arith.mulf %46, %53 : vector<8x128xf32>
    %cst_23 = arith.constant dense<0.000000e+00> : vector<8x128xf32>
    %55 = tpu.matmul %54, %0, %cst_23 {dimension_numbers = #tpu.dot_dimension_numbers<[1], [0], [0], [1], [0, 0, 1, 1], [], []>} : vector<8x128xf32>, vector<128x128xf32>, vector<8x128xf32> -> vector<8x128xf32>
    %56 = arith.addf %55, %4 : vector<8x128xf32>
    %cst_24 = arith.constant 0.000000e+00 : f32
    %57 = vector.broadcast %cst_24 : f32 to vector<8x128xf32>
    %58 = arith.maximumf %56, %57 : vector<8x128xf32>
    %cst_25 = arith.constant dense<0.000000e+00> : vector<8x128xf32>
    %59 = tpu.matmul %58, %1, %cst_25 {dimension_numbers = #tpu.dot_dimension_numbers<[1], [0], [0], [1], [0, 0, 1, 1], [], []>} : vector<8x128xf32>, vector<128x128xf32>, vector<8x128xf32> -> vector<8x128xf32>
    %60 = arith.addf %59, %7 : vector<8x128xf32>
    %cst_26 = arith.constant dense<0xFF800000> : vector<8xf32>
    %61 = vector.multi_reduction <maximumf>, %60, %cst_26 [1] : vector<8x128xf32> to vector<8xf32>
    %62 = vector.shape_cast %61 : vector<8xf32> to vector<8x1xf32>
    %63 = vector.broadcast %62 : vector<8x1xf32> to vector<8x128xf32>
    %64 = arith.subf %60, %63 : vector<8x128xf32>
    %65 = math.exp %64 : vector<8x128xf32>
    %cst_27 = arith.constant dense<0.000000e+00> : vector<8xf32>
    %66 = vector.multi_reduction <add>, %65, %cst_27 [1] : vector<8x128xf32> to vector<8xf32>
    %67 = vector.shape_cast %66 : vector<8xf32> to vector<8x1xf32>
    %68 = tpu.reciprocal %67 {approx = true} : vector<8x1xf32> -> vector<8x1xf32>
    %69 = vector.broadcast %68 : vector<8x1xf32> to vector<8x128xf32>
    %70 = arith.mulf %65, %69 : vector<8x128xf32>
    %71 = arith.truncf %54 : vector<8x128xf32> to vector<8x128xbf16>
    %72 = arith.truncf %70 : vector<8x128xf32> to vector<8x128xbf16>
    %cst_28 = arith.constant dense<0.000000e+00> : vector<128x128xf32>
    %73 = tpu.matmul %71, %71, %cst_28 {dimension_numbers = #tpu.dot_dimension_numbers<[0], [0], [1], [1], [0, 1, 1, 1], [], []>} : vector<8x128xbf16>, vector<8x128xbf16>, vector<128x128xf32> -> vector<128x128xf32>
    %cst_29 = arith.constant dense<0.000000e+00> : vector<128x128xf32>
    %74 = tpu.matmul %72, %71, %cst_29 {dimension_numbers = #tpu.dot_dimension_numbers<[0], [0], [1], [1], [0, 1, 1, 1], [], []>} : vector<8x128xbf16>, vector<8x128xbf16>, vector<128x128xf32> -> vector<128x128xf32>
    %75 = arith.truncf %74 : vector<128x128xf32> to vector<128x128xbf16>
    %cst_30 = arith.constant dense<0.000000e+00> : vector<8x128xf32>
    %76 = tpu.matmul %72, %75, %cst_30 {dimension_numbers = #tpu.dot_dimension_numbers<[1], [0], [0], [1], [0, 0, 1, 1], [], []>} : vector<8x128xbf16>, vector<128x128xbf16>, vector<8x128xf32> -> vector<8x128xf32>
    %cst_31 = arith.constant 9.99999974E-5 : f32
    %77 = vector.broadcast %cst_31 : f32 to vector<8x128xf32>
    %78 = arith.mulf %77, %76 : vector<8x128xf32>
    %79 = arith.addf %54, %78 : vector<8x128xf32>
    %80 = arith.truncf %73 : vector<128x128xf32> to vector<128x128xbf16>
    %cst_32 = arith.constant dense<0.000000e+00> : vector<8x128xf32>
    %81 = tpu.matmul %71, %80, %cst_32 {dimension_numbers = #tpu.dot_dimension_numbers<[1], [0], [0], [1], [0, 0, 1, 1], [], []>} : vector<8x128xbf16>, vector<128x128xbf16>, vector<8x128xf32> -> vector<8x128xf32>
    %cst_33 = arith.constant 9.99999974E-5 : f32
    %82 = vector.broadcast %cst_33 : f32 to vector<8x128xf32>
    %83 = arith.mulf %82, %81 : vector<8x128xf32>
    %84 = arith.subf %79, %83 : vector<8x128xf32>
    %85 = arith.mulf %84, %84 : vector<8x128xf32>
    %cst_34 = arith.constant dense<0.000000e+00> : vector<8xf32>
    %86 = vector.multi_reduction <add>, %85, %cst_34 [1] : vector<8x128xf32> to vector<8xf32>
    %87 = vector.shape_cast %86 : vector<8xf32> to vector<8x1xf32>
    %cst_35 = arith.constant 9.99999996E-13 : f32
    %88 = vector.broadcast %cst_35 : f32 to vector<8x1xf32>
    %89 = arith.addf %87, %88 : vector<8x1xf32>
    %90 = math.rsqrt %89 : vector<8x1xf32>
    %91 = vector.broadcast %90 : vector<8x1xf32> to vector<8x128xf32>
    %92 = arith.mulf %84, %91 : vector<8x128xf32>
    %cst_36 = arith.constant dense<0.000000e+00> : vector<8x128xf32>
    %93 = tpu.matmul %92, %0, %cst_36 {dimension_numbers = #tpu.dot_dimension_numbers<[1], [0], [0], [1], [0, 0, 1, 1], [], []>} : vector<8x128xf32>, vector<128x128xf32>, vector<8x128xf32> -> vector<8x128xf32>
    %94 = arith.addf %93, %4 : vector<8x128xf32>
    %cst_37 = arith.constant 0.000000e+00 : f32
    %95 = vector.broadcast %cst_37 : f32 to vector<8x128xf32>
    %96 = arith.maximumf %94, %95 : vector<8x128xf32>
    %cst_38 = arith.constant dense<0.000000e+00> : vector<8x128xf32>
    %97 = tpu.matmul %96, %1, %cst_38 {dimension_numbers = #tpu.dot_dimension_numbers<[1], [0], [0], [1], [0, 0, 1, 1], [], []>} : vector<8x128xf32>, vector<128x128xf32>, vector<8x128xf32> -> vector<8x128xf32>
    %98 = arith.addf %97, %7 : vector<8x128xf32>
    %cst_39 = arith.constant dense<0xFF800000> : vector<8xf32>
    %99 = vector.multi_reduction <maximumf>, %98, %cst_39 [1] : vector<8x128xf32> to vector<8xf32>
    %100 = vector.shape_cast %99 : vector<8xf32> to vector<8x1xf32>
    %101 = vector.broadcast %100 : vector<8x1xf32> to vector<8x128xf32>
    %102 = arith.subf %98, %101 : vector<8x128xf32>
    %103 = math.exp %102 : vector<8x128xf32>
    %cst_40 = arith.constant dense<0.000000e+00> : vector<8xf32>
    %104 = vector.multi_reduction <add>, %103, %cst_40 [1] : vector<8x128xf32> to vector<8xf32>
    %105 = vector.shape_cast %104 : vector<8xf32> to vector<8x1xf32>
    %106 = tpu.reciprocal %105 {approx = true} : vector<8x1xf32> -> vector<8x1xf32>
    %107 = vector.broadcast %106 : vector<8x1xf32> to vector<8x128xf32>
    %108 = arith.mulf %103, %107 : vector<8x128xf32>
    %109 = arith.truncf %92 : vector<8x128xf32> to vector<8x128xbf16>
    %110 = arith.truncf %108 : vector<8x128xf32> to vector<8x128xbf16>
    %cst_41 = arith.constant dense<0.000000e+00> : vector<128x128xf32>
    %111 = tpu.matmul %109, %109, %cst_41 {dimension_numbers = #tpu.dot_dimension_numbers<[0], [0], [1], [1], [0, 1, 1, 1], [], []>} : vector<8x128xbf16>, vector<8x128xbf16>, vector<128x128xf32> -> vector<128x128xf32>
    %cst_42 = arith.constant dense<0.000000e+00> : vector<128x128xf32>
    %112 = tpu.matmul %110, %109, %cst_42 {dimension_numbers = #tpu.dot_dimension_numbers<[0], [0], [1], [1], [0, 1, 1, 1], [], []>} : vector<8x128xbf16>, vector<8x128xbf16>, vector<128x128xf32> -> vector<128x128xf32>
    %113 = arith.truncf %112 : vector<128x128xf32> to vector<128x128xbf16>
    %cst_43 = arith.constant dense<0.000000e+00> : vector<8x128xf32>
    %114 = tpu.matmul %110, %113, %cst_43 {dimension_numbers = #tpu.dot_dimension_numbers<[1], [0], [0], [1], [0, 0, 1, 1], [], []>} : vector<8x128xbf16>, vector<128x128xbf16>, vector<8x128xf32> -> vector<8x128xf32>
    %cst_44 = arith.constant 9.99999974E-5 : f32
    %115 = vector.broadcast %cst_44 : f32 to vector<8x128xf32>
    %116 = arith.mulf %115, %114 : vector<8x128xf32>
    %117 = arith.addf %92, %116 : vector<8x128xf32>
    %118 = arith.truncf %111 : vector<128x128xf32> to vector<128x128xbf16>
    %cst_45 = arith.constant dense<0.000000e+00> : vector<8x128xf32>
    %119 = tpu.matmul %109, %118, %cst_45 {dimension_numbers = #tpu.dot_dimension_numbers<[1], [0], [0], [1], [0, 0, 1, 1], [], []>} : vector<8x128xbf16>, vector<128x128xbf16>, vector<8x128xf32> -> vector<8x128xf32>
    %cst_46 = arith.constant 9.99999974E-5 : f32
    %120 = vector.broadcast %cst_46 : f32 to vector<8x128xf32>
    %121 = arith.mulf %120, %119 : vector<8x128xf32>
    %122 = arith.subf %117, %121 : vector<8x128xf32>
    %cst_47 = arith.constant dense<0.000000e+00> : vector<8x128xf32>
    %123 = tpu.matmul %122, %0, %cst_47 {dimension_numbers = #tpu.dot_dimension_numbers<[1], [0], [0], [1], [0, 0, 1, 1], [], []>} : vector<8x128xf32>, vector<128x128xf32>, vector<8x128xf32> -> vector<8x128xf32>
    %124 = arith.addf %123, %4 : vector<8x128xf32>
    %cst_48 = arith.constant 0.000000e+00 : f32
    %125 = vector.broadcast %cst_48 : f32 to vector<8x128xf32>
    %126 = arith.maximumf %124, %125 : vector<8x128xf32>
    %cst_49 = arith.constant dense<0.000000e+00> : vector<8x128xf32>
    %127 = tpu.matmul %126, %1, %cst_49 {dimension_numbers = #tpu.dot_dimension_numbers<[1], [0], [0], [1], [0, 0, 1, 1], [], []>} : vector<8x128xf32>, vector<128x128xf32>, vector<8x128xf32> -> vector<8x128xf32>
    %128 = arith.addf %127, %7 : vector<8x128xf32>
    %c0_50 = arith.constant 0 : index
    %c0_51 = arith.constant 0 : index
    %129 = vector.load %arg5[%c0_50, %c0_51] : memref<8x128xf32, #tpu.memory_space<vmem>>, vector<8x128xf32>
    tpu.vector_store %arg5[%c0_50, %c0_51], %128 {strides = array<i32>} : memref<8x128xf32, #tpu.memory_space<vmem>>, vector<8x128xf32>,
    return
  }
}

</mosaic_0001>

<llo_original>
// kernel: tpu_custom_call.1
$region0: #{tpu_custom_call.1}
  #allocation0 [shape = 'u32[]', space=smem, size = 0x4, offset = 0x4, fixed_abs, tag = 'smem constant byte address 0x4 - core index']
  #allocation1 [shape = 'u32[144,128]{1,0:T(1,128)}', space=vmem, size = 0x12000, scoped, tag = 'internal scratch']
  %s0 = inlined_call_operand.hbm [shape: f32[8,128], index: 0, kind: input, shape index: {}]
  %s1 = inlined_call_operand.hbm [shape: f32[128,128], index: 1, kind: input, shape index: {}]
  %s2 = inlined_call_operand.vmem [shape: f32[1,128], index: 2, kind: input, shape index: {}]
  %s3 = inlined_call_operand.hbm [shape: f32[128,128], index: 3, kind: input, shape index: {}]
  %s4 = inlined_call_operand.vmem [shape: f32[1,128], index: 4, kind: input, shape index: {}]
  %s5 = inlined_call_operand.hbm [shape: f32[8,128], index: 5, kind: output, shape index: {}]
  %s6 = sld [smem:[#allocation0]]
  $region42: #{tpu_custom_call.1} parent=0
    _
  %s8 = ssub.s32 1, %s6
  %s9 = scalar_select 0, %s8, %s6
  $region1: #{tpu_custom_call.1} parent=0
    #allocation2 [shape = 'u8[4096]{0}', space=vmem, size = 0x1000, scoped, tag = 'input window, operand 0, single buffered']
    #allocation3 [shape = 's32[1]{0}', space=sflag, size = 0x4, scoped, tag = 'scoped memory for tpu_custom_call.1']
    #allocation4 [shape = 's32[1]{0}', space=sflag, size = 0x4, scoped, tag = 'scoped memory for tpu_custom_call.1']
    #allocation5 [shape = 'u8[65536]{0}', space=vmem, size = 0x10000, scoped, tag = 'input window, operand 1, single buffered']
    #allocation6 [shape = 's32[1]{0}', space=sflag, size = 0x4, scoped, tag = 'scoped memory for tpu_custom_call.1']
    #allocation7 [shape = 'u8[65536]{0}', space=vmem, size = 0x10000, scoped, tag = 'input window, operand 3, single buffered']
    #allocation8 [shape = 'u8[4096]{0}', space=vmem, size = 0x1000, scoped, tag = 'output window, operand 0, single buffered']
    %10 = vsyncpa [#allocation3], 0
    %11 = vsyncpa [#allocation6], 0
    %12 = vsyncpa [#allocation4], 0
    // Predicated region
    $region2: #{tpu_custom_call.1} parent=1 // pred_check
      _
    $region3: #{tpu_custom_call.1} parent=1 // pred_check_branch
      %14 = sbr.rel (0) target = $region5
    $region4: #{tpu_custom_call.1} parent=1 // pred_region
      %s16 = ssub.s32 128, 128
      %17 = vsyncadd [#allocation3], %s16
      %s19 = sshll.u32 [#allocation2], 4
      %s20 = int_to_ptr.vmem [resolvable:$true] %s19
      %22 = dma.hbm_to_vmem [thread:$0]  %s0, 128, %s20, [#allocation3]
    $region5: #{tpu_custom_call.1} parent=1 // pred_fallthru
      _
    // Predicated region
    $region6: #{tpu_custom_call.1} parent=1 // pred_check
      _
    $region7: #{tpu_custom_call.1} parent=1 // pred_check_branch
      %24 = sbr.rel (0) target = $region9
    $region8: #{tpu_custom_call.1} parent=1 // pred_region
      %s26 = ssub.s32 2048, 2048
      %27 = vsyncadd [#allocation6], %s26
      %s28 = sshll.u32 [#allocation5], 4
      %s29 = int_to_ptr.vmem [resolvable:$true] %s28
      %34 = dma.hbm_to_vmem [thread:$0]  %s1, 2048, %s29, [#allocation6], 128, 128, 8
    $region9: #{tpu_custom_call.1} parent=1 // pred_fallthru
      _
    // Predicated region
    $region10: #{tpu_custom_call.1} parent=1 // pred_check
      _
    $region11: #{tpu_custom_call.1} parent=1 // pred_check_branch
      %36 = sbr.rel (0) target = $region13
    $region12: #{tpu_custom_call.1} parent=1 // pred_region
      _
    $region13: #{tpu_custom_call.1} parent=1 // pred_fallthru
      _
    // Predicated region
    $region14: #{tpu_custom_call.1} parent=1 // pred_check
      _
    $region15: #{tpu_custom_call.1} parent=1 // pred_check_branch
      %38 = sbr.rel (0) target = $region17
    $region16: #{tpu_custom_call.1} parent=1 // pred_region
      %s40 = ssub.s32 2048, 2048
      %41 = vsyncadd [#allocation6], %s40
      %s42 = sshll.u32 [#allocation7], 4
      %s43 = int_to_ptr.vmem [resolvable:$true] %s42
      %48 = dma.hbm_to_vmem [thread:$0]  %s3, 2048, %s43, [#allocation6], 128, 128, 8
    $region17: #{tpu_custom_call.1} parent=1 // pred_fallthru
      _
    // Predicated region
    $region18: #{tpu_custom_call.1} parent=1 // pred_check
      _
    $region19: #{tpu_custom_call.1} parent=1 // pred_check_branch
      %50 = sbr.rel (0) target = $region21
    $region20: #{tpu_custom_call.1} parent=1 // pred_region
      _
    $region21: #{tpu_custom_call.1} parent=1 // pred_fallthru
      _
    // Predicated region
    $region22: #{tpu_custom_call.1} parent=1 // pred_check
      _
    $region23: #{tpu_custom_call.1} parent=1 // pred_check_branch
      %52 = sbr.rel (0) target = $region25
    $region24: #{tpu_custom_call.1} parent=1 // pred_region
      %53 = dma.done [#allocation3], 128
    $region25: #{tpu_custom_call.1} parent=1 // pred_fallthru
      _
    // Predicated region
    $region26: #{tpu_custom_call.1} parent=1 // pred_check
      _
    $region27: #{tpu_custom_call.1} parent=1 // pred_check_branch
      %55 = sbr.rel (0) target = $region29
    $region28: #{tpu_custom_call.1} parent=1 // pred_region
      %56 = dma.done [#allocation6], 2048
    $region29: #{tpu_custom_call.1} parent=1 // pred_fallthru
      _
    // Predicated region
    $region30: #{tpu_custom_call.1} parent=1 // pred_check
      _
    $region31: #{tpu_custom_call.1} parent=1 // pred_check_branch
      %58 = sbr.rel (0) target = $region33
    $region32: #{tpu_custom_call.1} parent=1 // pred_region
      %59 = dma.done [#allocation6], 2048
    $region33: #{tpu_custom_call.1} parent=1 // pred_fallthru
      _
    %v61 = vld [vmem:[#allocation5] sm:$0xff]
    %v62 = vld [vmem:[#allocation5 + $0x8] sm:$0xff]
    %v63 = vld [vmem:[#allocation5 + $0x10] sm:$0xff]
    %v64 = vld [vmem:[#allocation5 + $0x18] sm:$0xff]
    %v65 = vld [vmem:[#allocation5 + $0x20] sm:$0xff]
    %v66 = vld [vmem:[#allocation5 + $0x28] sm:$0xff]
    %v67 = vld [vmem:[#allocation5 + $0x30] sm:$0xff]
    %v68 = vld [vmem:[#allocation5 + $0x38] sm:$0xff]
    %v69 = vld [vmem:[#allocation5 + $0x40] sm:$0xff]
    %v70 = vld [vmem:[#allocation5 + $0x48] sm:$0xff]
    %v71 = vld [vmem:[#allocation5 + $0x50] sm:$0xff]
    %v72 = vld [vmem:[#allocation5 + $0x58] sm:$0xff]
    %v73 = vld [vmem:[#allocation5 + $0x60] sm:$0xff]
    %v74 = vld [vmem:[#allocation5 + $0x68] sm:$0xff]
    %v75 = vld [vmem:[#allocation5 + $0x70] sm:$0xff]
    %v76 = vld [vmem:[#allocation5 + $0x78] sm:$0xff]
    %v77 = vld [vmem:[#allocation7] sm:$0xff]
    %v78 = vld [vmem:[#allocation7 + $0x8] sm:$0xff]
    %v79 = vld [vmem:[#allocation7 + $0x10] sm:$0xff]
    %v80 = vld [vmem:[#allocation7 + $0x18] sm:$0xff]
    %v81 = vld [vmem:[#allocation7 + $0x20] sm:$0xff]
    %v82 = vld [vmem:[#allocation7 + $0x28] sm:$0xff]
    %v83 = vld [vmem:[#allocation7 + $0x30] sm:$0xff]
    %v84 = vld [vmem:[#allocation7 + $0x38] sm:$0xff]
    %v85 = vld [vmem:[#allocation7 + $0x40] sm:$0xff]
    %v86 = vld [vmem:[#allocation7 + $0x48] sm:$0xff]
    %v87 = vld [vmem:[#allocation7 + $0x50] sm:$0xff]
    %v88 = vld [vmem:[#allocation7 + $0x58] sm:$0xff]
    %v89 = vld [vmem:[#allocation7 + $0x60] sm:$0xff]
    %v90 = vld [vmem:[#allocation7 + $0x68] sm:$0xff]
    %v91 = vld [vmem:[#allocation7 + $0x70] sm:$0xff]
    %v92 = vld [vmem:[#allocation7 + $0x78] sm:$0xff]
    %v93 = vld [vmem:[%s2] sm:$0x1]
    %v95 = vlaneseq
    %v96 = vshrl.u32 %v95, 7
    %v97 = vsub.s32 0, %v96
    %v98 = vrot.slane %v93, %v97
    %v100 = vld [vmem:[%s4] sm:$0x1]
    %v102 = vlaneseq
    %v103 = vshrl.u32 %v102, 7
    %v104 = vsub.s32 0, %v103
    %v105 = vrot.slane %v100, %v104
    %v107 = vld [vmem:[#allocation2] sm:$0xff]
    %v108 = vmul.f32 %v107, %v107
    %109 = vadd.xlane.f32.xlu0 %v108
    %v110 = vpop.xlane.xlu0 %109
    %v111 = vadd.f32 %v110, 1e-12
    %v112 = vrsqrt.pop %v111
    %v113 = vmul.f32 %v107, %v112
    %114 = vmatprep.subr.mxu0 0.0
    %115 = vmatpush1.msra.mxu0 %v76
    %116 = vmatprep.subr.mxu0 0.0
    %117 = vmatpush1.msra.mxu0 %v75
    %118 = vmatprep.subr.mxu0 0.0
    %119 = vmatpush1.msra.mxu0 %v74
    %120 = vmatprep.subr.mxu0 0.0
    %121 = vmatpush1.msra.mxu0 %v73
    %122 = vmatprep.subr.mxu0 0.0
    %123 = vmatpush1.msra.mxu0 %v72
    %124 = vmatprep.subr.mxu0 0.0
    %125 = vmatpush1.msra.mxu0 %v71
    %126 = vmatprep.subr.mxu0 0.0
    %127 = vmatpush1.msra.mxu0 %v70
    %128 = vmatprep.subr.mxu0 0.0
    %129 = vmatpush1.msra.mxu0 %v69
    %130 = vmatprep.subr.mxu0 0.0
    %131 = vmatpush1.msra.mxu0 %v68
    %132 = vmatprep.subr.mxu0 0.0
    %133 = vmatpush1.msra.mxu0 %v67
    %134 = vmatprep.subr.mxu0 0.0
    %135 = vmatpush1.msra.mxu0 %v66
    %136 = vmatprep.subr.mxu0 0.0
    %137 = vmatpush1.msra.mxu0 %v65
    %138 = vmatprep.subr.mxu0 0.0
    %139 = vmatpush1.msra.mxu0 %v64
    %140 = vmatprep.subr.mxu0 0.0
    %141 = vmatpush1.msra.mxu0 %v63
    %142 = vmatprep.subr.mxu0 0.0
    %143 = vmatpush1.msra.mxu0 %v62
    %144 = vmatprep.subr.mxu0 0.0
    %145 = vmatpush1.msra.mxu0 %v61
    %146 = vmatprep.subr.mxu0 0.0
    %147 = vmatpush2.msra.mxu0 0.0
    %148 = vmatprep.subr.mxu0 0.0
    %149 = vmatpush2.msra.mxu0 0.0
    %150 = vmatprep.subr.mxu0 0.0
    %151 = vmatpush2.msra.mxu0 0.0
    %152 = vmatprep.subr.mxu0 0.0
    %153 = vmatpush2.msra.mxu0 0.0
    %154 = vmatprep.subr.mxu0 0.0
    %155 = vmatpush2.msra.mxu0 0.0
    %156 = vmatprep.subr.mxu0 0.0
    %157 = vmatpush2.msra.mxu0 0.0
    %158 = vmatprep.subr.mxu0 0.0
    %159 = vmatpush2.msra.mxu0 0.0
    %160 = vmatprep.subr.mxu0 0.0
    %161 = vmatpush2.msra.mxu0 0.0
    %162 = vmatprep.subr.mxu0 0.0
    %163 = vmatpush2.msra.mxu0 0.0
    %164 = vmatprep.subr.mxu0 0.0
    %165 = vmatpush2.msra.mxu0 0.0
    %166 = vmatprep.subr.mxu0 0.0
    %167 = vmatpush2.msra.mxu0 0.0
    %168 = vmatprep.subr.mxu0 0.0
    %169 = vmatpush2.msra.mxu0 0.0
    %170 = vmatprep.subr.mxu0 0.0
    %171 = vmatpush2.msra.mxu0 0.0
    %172 = vmatprep.subr.mxu0 0.0
    %173 = vmatpush2.msra.mxu0 0.0
    %174 = vmatprep.subr.mxu0 0.0
    %175 = vmatpush2.msra.mxu0 0.0
    %176 = vmatprep.subr.mxu0 0.0
    %177 = vmatpush2.msra.mxu0 0.0
    %178 = vmatprep.mubr.f32.mxu0 0.0
    %179 = vmatmul.mubr.f32.gmra.mxu0 %v113
    %v180 = vpop.f32.mrf.mxu0
    %v181 = vadd.f32 %v98, %v180
    %v182 = vpop.f32.mrf.mxu0
    %183 = vdwg.mxu0
    %v184 = vmax.f32 %v181, 0.0
    %185 = vmatprep.subr.mxu0 0.0
    %186 = vmatpush1.msra.mxu0 %v92
    %187 = vmatprep.subr.mxu0 0.0
    %188 = vmatpush1.msra.mxu0 %v91
    %189 = vmatprep.subr.mxu0 0.0
    %190 = vmatpush1.msra.mxu0 %v90
    %191 = vmatprep.subr.mxu0 0.0
    %192 = vmatpush1.msra.mxu0 %v89
    %193 = vmatprep.subr.mxu0 0.0
    %194 = vmatpush1.msra.mxu0 %v88
    %195 = vmatprep.subr.mxu0 0.0
    %196 = vmatpush1.msra.mxu0 %v87
    %197 = vmatprep.subr.mxu0 0.0
    %198 = vmatpush1.msra.mxu0 %v86
    %199 = vmatprep.subr.mxu0 0.0
    %200 = vmatpush1.msra.mxu0 %v85
    %201 = vmatprep.subr.mxu0 0.0
    %202 = vmatpush1.msra.mxu0 %v84
    %203 = vmatprep.subr.mxu0 0.0
    %204 = vmatpush1.msra.mxu0 %v83
    %205 = vmatprep.subr.mxu0 0.0
    %206 = vmatpush1.msra.mxu0 %v82
    %207 = vmatprep.subr.mxu0 0.0
    %208 = vmatpush1.msra.mxu0 %v81
    %209 = vmatprep.subr.mxu0 0.0
    %210 = vmatpush1.msra.mxu0 %v80
    %211 = vmatprep.subr.mxu0 0.0
    %212 = vmatpush1.msra.mxu0 %v79
    %213 = vmatprep.subr.mxu0 0.0
    %214 = vmatpush1.msra.mxu0 %v78
    %215 = vmatprep.subr.mxu0 0.0
    %216 = vmatpush1.msra.mxu0 %v77
    %217 = vmatprep.subr.mxu0 0.0
    %218 = vmatpush2.msra.mxu0 0.0
    %219 = vmatprep.subr.mxu0 0.0
    %220 = vmatpush2.msra.mxu0 0.0
    %221 = vmatprep.subr.mxu0 0.0
    %222 = vmatpush2.msra.mxu0 0.0
    %223 = vmatprep.subr.mxu0 0.0
    %224 = vmatpush2.msra.mxu0 0.0
    %225 = vmatprep.subr.mxu0 0.0
    %226 = vmatpush2.msra.mxu0 0.0
    %227 = vmatprep.subr.mxu0 0.0
    %228 = vmatpush2.msra.mxu0 0.0
    %229 = vmatprep.subr.mxu0 0.0
    %230 = vmatpush2.msra.mxu0 0.0
    %231 = vmatprep.subr.mxu0 0.0
    %232 = vmatpush2.msra.mxu0 0.0
    %233 = vmatprep.subr.mxu0 0.0
    %234 = vmatpush2.msra.mxu0 0.0
    %235 = vmatprep.subr.mxu0 0.0
    %236 = vmatpush2.msra.mxu0 0.0
    %237 = vmatprep.subr.mxu0 0.0
    %238 = vmatpush2.msra.mxu0 0.0
    %239 = vmatprep.subr.mxu0 0.0
    %240 = vmatpush2.msra.mxu0 0.0
    %241 = vmatprep.subr.mxu0 0.0
    %242 = vmatpush2.msra.mxu0 0.0
    %243 = vmatprep.subr.mxu0 0.0
    %244 = vmatpush2.msra.mxu0 0.0
    %245 = vmatprep.subr.mxu0 0.0
    %246 = vmatpush2.msra.mxu0 0.0
    %247 = vmatprep.subr.mxu0 0.0
    %248 = vmatpush2.msra.mxu0 0.0
    %249 = vmatprep.mubr.f32.mxu0 0.0
    %250 = vmatmul.mubr.f32.gmra.mxu0 %v184
    %v251 = vpop.f32.mrf.mxu0
    %v252 = vadd.f32 %v105, %v251
    %v253 = vpop.f32.mrf.mxu0
    %254 = vdwg.mxu0
    %255 = vmax.xlane.f32.xlu0 %v252
    %v256 = vpop.xlane.xlu0 %255
    %v257 = vsub.f32 %v252, %v256
    %v258 = vmul.f32 %v257, 1.442695
    %v259 = vpow.pop %v258
    %260 = vadd.xlane.f32.xlu0 %v259
    %v261 = vpop.xlane.xlu0 %260
    %v262 = vrcp.pop %v261
    %v263 = vmul.f32 %v259, %v262
    %v264 = vpack.c.bf16 %v113, %v113
    %v265 = vpack.c.bf16 %v263, %v263
    %266 = vxpose.xlu0.c.b16.start [1/8] %v264, 128
    %267 = vxpose.xlu0.c.b16.cont [2/8] 0, 128
    %268 = vxpose.xlu0.c.b16.cont [3/8] 0, 128
    %269 = vxpose.xlu0.c.b16.cont [4/8] 0, 128
    %270 = vxpose.xlu0.c.b16.cont [5/8] 0, 128
    %271 = vxpose.xlu0.c.b16.cont [6/8] 0, 128
    %272 = vxpose.xlu0.c.b16.cont [7/8] 0, 128
    %273 = vxpose.xlu0.c.b16.end [8/8] 0, 128
    %v274 = vpop.trf.xlu0
    %v275 = vpop.trf.xlu0
    %v276 = vpop.trf.xlu0
    %v277 = vpop.trf.xlu0
    %v278 = vpop.trf.xlu0
    %v279 = vpop.trf.xlu0
    %v280 = vpop.trf.xlu0
    %v281 = vpop.trf.xlu0
    %vm282 = vcmask 64512
    %v284 = vsel %vm282, %v274, 0
    %v287 = vsel %vm282, %v275, 0
    %v290 = vsel %vm282, %v276, 0
    %v293 = vsel %vm282, %v277, 0
    %v296 = vsel %vm282, %v278, 0
    %v299 = vsel %vm282, %v279, 0
    %v302 = vsel %vm282, %v280, 0
    %v305 = vsel %vm282, %v281, 0
    %vm307 = vcmask 1043456
    %v309 = vsel %vm307, %v264, 0
    %311 = vmatprep.subr.bf16.mxu0 0
    %312 = vmatpush1.bf16.msra.mxu0 0
    %313 = vmatprep.subr.bf16.mxu0 0
    %314 = vmatpush1.bf16.msra.mxu0 0
    %315 = vmatprep.subr.bf16.mxu0 0
    %316 = vmatpush1.bf16.msra.mxu0 0
    %317 = vmatprep.subr.bf16.mxu0 0
    %318 = vmatpush1.bf16.msra.mxu0 0
    %319 = vmatprep.subr.bf16.mxu0 0
    %320 = vmatpush1.bf16.msra.mxu0 0
    %321 = vmatprep.subr.bf16.mxu0 0
    %322 = vmatpush1.bf16.msra.mxu0 0
    %323 = vmatprep.subr.bf16.mxu0 0
    %324 = vmatpush1.bf16.msra.mxu0 0
    %325 = vmatprep.subr.bf16.mxu0 0
    %326 = vmatpush1.bf16.msra.mxu0 %v309
    %327 = vmatprep.subr.bf16.mxu0 0
    %328 = vmatpush2.bf16.msra.mxu0 0
    %329 = vmatprep.subr.bf16.mxu0 0
    %330 = vmatpush2.bf16.msra.mxu0 0
    %331 = vmatprep.subr.bf16.mxu0 0
    %332 = vmatpush2.bf16.msra.mxu0 0
    %333 = vmatprep.subr.bf16.mxu0 0
    %334 = vmatpush2.bf16.msra.mxu0 0
    %335 = vmatprep.subr.bf16.mxu0 0
    %336 = vmatpush2.bf16.msra.mxu0 0
    %337 = vmatprep.subr.bf16.mxu0 0
    %338 = vmatpush2.bf16.msra.mxu0 0
    %339 = vmatprep.subr.bf16.mxu0 0
    %340 = vmatpush2.bf16.msra.mxu0 0
    %341 = vmatprep.subr.bf16.mxu0 0
    %342 = vmatpush2.bf16.msra.mxu0 0
    %343 = vmatprep.mubr.bf16.mxu0 0
    %344 = vmatmul.mubr.bf16.gmra.mxu0 %v284
    %v345 = vpop.f32.mrf.mxu0
    %v346 = vadd.f32 0.0, %v345
    %v347 = vpop.f32.mrf.mxu0
    %v348 = vpop.f32.mrf.mxu0
    %v349 = vadd.f32 0.0, %v348
    %v350 = vpop.f32.mrf.mxu0
    %351 = vmatprep.mubr.bf16.mxu0 0
    %352 = vmatmul.mubr.bf16.gmra.mxu0 %v287
    %v353 = vpop.f32.mrf.mxu0
    %v354 = vadd.f32 0.0, %v353
    %v355 = vpop.f32.mrf.mxu0
    %v356 = vpop.f32.mrf.mxu0
    %v357 = vadd.f32 0.0, %v356
    %v358 = vpop.f32.mrf.mxu0
    %359 = vmatprep.mubr.bf16.mxu0 0
    %360 = vmatmul.mubr.bf16.gmra.mxu0 %v290
    %v361 = vpop.f32.mrf.mxu0
    %v362 = vadd.f32 0.0, %v361
    %v363 = vpop.f32.mrf.mxu0
    %v364 = vpop.f32.mrf.mxu0
    %v365 = vadd.f32 0.0, %v364
    %v366 = vpop.f32.mrf.mxu0
    %367 = vmatprep.mubr.bf16.mxu0 0
    %368 = vmatmul.mubr.bf16.gmra.mxu0 %v293
    %v369 = vpop.f32.mrf.mxu0
    %v370 = vadd.f32 0.0, %v369
    %v371 = vpop.f32.mrf.mxu0
    %v372 = vpop.f32.mrf.mxu0
    %v373 = vadd.f32 0.0, %v372
    %v374 = vpop.f32.mrf.mxu0
    %375 = vmatprep.mubr.bf16.mxu0 0
    %376 = vmatmul.mubr.bf16.gmra.mxu0 %v296
    %v377 = vpop.f32.mrf.mxu0
    %v378 = vadd.f32 0.0, %v377
    %v379 = vpop.f32.mrf.mxu0
    %v380 = vpop.f32.mrf.mxu0
    %v381 = vadd.f32 0.0, %v380
    %v382 = vpop.f32.mrf.mxu0
    %383 = vmatprep.mubr.bf16.mxu0 0
    %384 = vmatmul.mubr.bf16.gmra.mxu0 %v299
    %v385 = vpop.f32.mrf.mxu0
    %v386 = vadd.f32 0.0, %v385
    %v387 = vpop.f32.mrf.mxu0
    %v388 = vpop.f32.mrf.mxu0
    %v389 = vadd.f32 0.0, %v388
    %v390 = vpop.f32.mrf.mxu0
    %391 = vmatprep.mubr.bf16.mxu0 0
    %392 = vmatmul.mubr.bf16.gmra.mxu0 %v302
    %v393 = vpop.f32.mrf.mxu0
    %v394 = vadd.f32 0.0, %v393
    %v395 = vpop.f32.mrf.mxu0
    %v396 = vpop.f32.mrf.mxu0
    %v397 = vadd.f32 0.0, %v396
    %v398 = vpop.f32.mrf.mxu0
    %399 = vmatprep.mubr.bf16.mxu0 0
    %400 = vmatmul.mubr.bf16.gmra.mxu0 %v305
    %v401 = vpop.f32.mrf.mxu0
    %v402 = vadd.f32 0.0, %v401
    %v403 = vpop.f32.mrf.mxu0
    %v404 = vpop.f32.mrf.mxu0
    %v405 = vadd.f32 0.0, %v404
    %v406 = vpop.f32.mrf.mxu0
    %407 = vdwg.mxu0
    %408 = vxpose.xlu0.c.b16.start [1/8] %v265, 128
    %409 = vxpose.xlu0.c.b16.cont [2/8] 0, 128
    %410 = vxpose.xlu0.c.b16.cont [3/8] 0, 128
    %411 = vxpose.xlu0.c.b16.cont [4/8] 0, 128
    %412 = vxpose.xlu0.c.b16.cont [5/8] 0, 128
    %413 = vxpose.xlu0.c.b16.cont [6/8] 0, 128
    %414 = vxpose.xlu0.c.b16.cont [7/8] 0, 128
    %415 = vxpose.xlu0.c.b16.end [8/8] 0, 128
    %v416 = vpop.trf.xlu0
    %v417 = vpop.trf.xlu0
    %v418 = vpop.trf.xlu0
    %v419 = vpop.trf.xlu0
    %v420 = vpop.trf.xlu0
    %v421 = vpop.trf.xlu0
    %v422 = vpop.trf.xlu0
    %v423 = vpop.trf.xlu0
    %v425 = vsel %vm282, %v416, 0
    %v428 = vsel %vm282, %v417, 0
    %v431 = vsel %vm282, %v418, 0
    %v434 = vsel %vm282, %v419, 0
    %v437 = vsel %vm282, %v420, 0
    %v440 = vsel %vm282, %v421, 0
    %v443 = vsel %vm282, %v422, 0
    %v446 = vsel %vm282, %v423, 0
    %448 = vmatprep.subr.bf16.mxu0 0
    %449 = vmatpush1.bf16.msra.mxu0 0
    %450 = vmatprep.subr.bf16.mxu0 0
    %451 = vmatpush1.bf16.msra.mxu0 0
    %452 = vmatprep.subr.bf16.mxu0 0
    %453 = vmatpush1.bf16.msra.mxu0 0
    %454 = vmatprep.subr.bf16.mxu0 0
    %455 = vmatpush1.bf16.msra.mxu0 0
    %456 = vmatprep.subr.bf16.mxu0 0
    %457 = vmatpush1.bf16.msra.mxu0 0
    %458 = vmatprep.subr.bf16.mxu0 0
    %459 = vmatpush1.bf16.msra.mxu0 0
    %460 = vmatprep.subr.bf16.mxu0 0
    %461 = vmatpush1.bf16.msra.mxu0 0
    %462 = vmatprep.subr.bf16.mxu0 0
    %463 = vmatpush1.bf16.msra.mxu0 %v309
    %464 = vmatprep.subr.bf16.mxu0 0
    %465 = vmatpush2.bf16.msra.mxu0 0
    %466 = vmatprep.subr.bf16.mxu0 0
    %467 = vmatpush2.bf16.msra.mxu0 0
    %468 = vmatprep.subr.bf16.mxu0 0
    %469 = vmatpush2.bf16.msra.mxu0 0
    %470 = vmatprep.subr.bf16.mxu0 0
    %471 = vmatpush2.bf16.msra.mxu0 0
    %472 = vmatprep.subr.bf16.mxu0 0
    %473 = vmatpush2.bf16.msra.mxu0 0
    %474 = vmatprep.subr.bf16.mxu0 0
    %475 = vmatpush2.bf16.msra.mxu0 0
    %476 = vmatprep.subr.bf16.mxu0 0
    %477 = vmatpush2.bf16.msra.mxu0 0
    %478 = vmatprep.subr.bf16.mxu0 0
    %479 = vmatpush2.bf16.msra.mxu0 0
    %480 = vmatprep.mubr.bf16.mxu0 0
    %481 = vmatmul.mubr.bf16.gmra.mxu0 %v425
    %v482 = vpop.f32.mrf.mxu0
    %v483 = vadd.f32 0.0, %v482
    %v484 = vpop.f32.mrf.mxu0
    %v485 = vpop.f32.mrf.mxu0
    %v486 = vadd.f32 0.0, %v485
    %v487 = vpop.f32.mrf.mxu0
    %488 = vmatprep.mubr.bf16.mxu0 0
    %489 = vmatmul.mubr.bf16.gmra.mxu0 %v428
    %v490 = vpop.f32.mrf.mxu0
    %v491 = vadd.f32 0.0, %v490
    %v492 = vpop.f32.mrf.mxu0
    %v493 = vpop.f32.mrf.mxu0
    %v494 = vadd.f32 0.0, %v493
    %v495 = vpop.f32.mrf.mxu0
    %496 = vmatprep.mubr.bf16.mxu0 0
    %497 = vmatmul.mubr.bf16.gmra.mxu0 %v431
    %v498 = vpop.f32.mrf.mxu0
    %v499 = vadd.f32 0.0, %v498
    %v500 = vpop.f32.mrf.mxu0
    %v501 = vpop.f32.mrf.mxu0
    %v502 = vadd.f32 0.0, %v501
    %v503 = vpop.f32.mrf.mxu0
    %504 = vmatprep.mubr.bf16.mxu0 0
    %505 = vmatmul.mubr.bf16.gmra.mxu0 %v434
    %v506 = vpop.f32.mrf.mxu0
    %v507 = vadd.f32 0.0, %v506
    %v508 = vpop.f32.mrf.mxu0
    %v509 = vpop.f32.mrf.mxu0
    %v510 = vadd.f32 0.0, %v509
    %v511 = vpop.f32.mrf.mxu0
    %512 = vmatprep.mubr.bf16.mxu0 0
    %513 = vmatmul.mubr.bf16.gmra.mxu0 %v437
    %v514 = vpop.f32.mrf.mxu0
    %v515 = vadd.f32 0.0, %v514
    %v516 = vpop.f32.mrf.mxu0
    %v517 = vpop.f32.mrf.mxu0
    %v518 = vadd.f32 0.0, %v517
    %v519 = vpop.f32.mrf.mxu0
    %520 = vmatprep.mubr.bf16.mxu0 0
    %521 = vmatmul.mubr.bf16.gmra.mxu0 %v440
    %v522 = vpop.f32.mrf.mxu0
    %v523 = vadd.f32 0.0, %v522
    %v524 = vpop.f32.mrf.mxu0
    %v525 = vpop.f32.mrf.mxu0
    %v526 = vadd.f32 0.0, %v525
    %v527 = vpop.f32.mrf.mxu0
    %528 = vmatprep.mubr.bf16.mxu0 0
    %529 = vmatmul.mubr.bf16.gmra.mxu0 %v443
    %v530 = vpop.f32.mrf.mxu0
    %v531 = vadd.f32 0.0, %v530
    %v532 = vpop.f32.mrf.mxu0
    %v533 = vpop.f32.mrf.mxu0
    %v534 = vadd.f32 0.0, %v533
    %v535 = vpop.f32.mrf.mxu0
    %536 = vmatprep.mubr.bf16.mxu0 0
    %537 = vmatmul.mubr.bf16.gmra.mxu0 %v446
    %v538 = vpop.f32.mrf.mxu0
    %v539 = vadd.f32 0.0, %v538
    %v540 = vpop.f32.mrf.mxu0
    %v541 = vpop.f32.mrf.mxu0
    %v542 = vadd.f32 0.0, %v541
    %v543 = vpop.f32.mrf.mxu0
    %544 = vdwg.mxu0
    %v545 = vpack.c.bf16 %v486, %v483
    %v546 = vpack.c.bf16 %v494, %v491
    %v547 = vpack.c.bf16 %v502, %v499
    %v548 = vpack.c.bf16 %v510, %v507
    %v549 = vpack.c.bf16 %v518, %v515
    %v550 = vpack.c.bf16 %v526, %v523
    %v551 = vpack.c.bf16 %v534, %v531
    %v552 = vpack.c.bf16 %v542, %v539
    %553 = vmatprep.subr.bf16.mxu0 0
    %554 = vmatpush1.bf16.msra.mxu0 %v552
    %555 = vmatprep.subr.bf16.mxu0 0
    %556 = vmatpush1.bf16.msra.mxu0 %v551
    %557 = vmatprep.subr.bf16.mxu0 0
    %558 = vmatpush1.bf16.msra.mxu0 %v550
    %559 = vmatprep.subr.bf16.mxu0 0
    %560 = vmatpush1.bf16.msra.mxu0 %v549
    %561 = vmatprep.subr.bf16.mxu0 0
    %562 = vmatpush1.bf16.msra.mxu0 %v548
    %563 = vmatprep.subr.bf16.mxu0 0
    %564 = vmatpush1.bf16.msra.mxu0 %v547
    %565 = vmatprep.subr.bf16.mxu0 0
    %566 = vmatpush1.bf16.msra.mxu0 %v546
    %567 = vmatprep.subr.bf16.mxu0 0
    %568 = vmatpush1.bf16.msra.mxu0 %v545
    %569 = vmatprep.subr.bf16.mxu0 0
    %570 = vmatpush2.bf16.msra.mxu0 0
    %571 = vmatprep.subr.bf16.mxu0 0
    %572 = vmatpush2.bf16.msra.mxu0 0
    %573 = vmatprep.subr.bf16.mxu0 0
    %574 = vmatpush2.bf16.msra.mxu0 0
    %575 = vmatprep.subr.bf16.mxu0 0
    %576 = vmatpush2.bf16.msra.mxu0 0
    %577 = vmatprep.subr.bf16.mxu0 0
    %578 = vmatpush2.bf16.msra.mxu0 0
    %579 = vmatprep.subr.bf16.mxu0 0
    %580 = vmatpush2.bf16.msra.mxu0 0
    %581 = vmatprep.subr.bf16.mxu0 0
    %582 = vmatpush2.bf16.msra.mxu0 0
    %583 = vmatprep.subr.bf16.mxu0 0
    %584 = vmatpush2.bf16.msra.mxu0 0
    %585 = vmatprep.mubr.bf16.mxu0 0
    %586 = vmatmul.mubr.bf16.gmra.mxu0 %v265
    %v587 = vpop.f32.mrf.mxu0
    %v588 = vadd.f32 0.0, %v587
    %v589 = vpop.f32.mrf.mxu0
    %v590 = vpop.f32.mrf.mxu0
    %v591 = vpop.f32.mrf.mxu0
    %592 = vdwg.mxu0
    %v593 = vmul.f32 %v588, 0.0001
    %v594 = vadd.f32 %v113, %v593
    %v595 = vpack.c.bf16 %v349, %v346
    %v596 = vpack.c.bf16 %v357, %v354
    %v597 = vpack.c.bf16 %v365, %v362
    %v598 = vpack.c.bf16 %v373, %v370
    %v599 = vpack.c.bf16 %v381, %v378
    %v600 = vpack.c.bf16 %v389, %v386
    %v601 = vpack.c.bf16 %v397, %v394
    %v602 = vpack.c.bf16 %v405, %v402
    %603 = vmatprep.subr.bf16.mxu0 0
    %604 = vmatpush1.bf16.msra.mxu0 %v602
    %605 = vmatprep.subr.bf16.mxu0 0
    %606 = vmatpush1.bf16.msra.mxu0 %v601
    %607 = vmatprep.subr.bf16.mxu0 0
    %608 = vmatpush1.bf16.msra.mxu0 %v600
    %609 = vmatprep.subr.bf16.mxu0 0
    %610 = vmatpush1.bf16.msra.mxu0 %v599
    %611 = vmatprep.subr.bf16.mxu0 0
    %612 = vmatpush1.bf16.msra.mxu0 %v598
    %613 = vmatprep.subr.bf16.mxu0 0
    %614 = vmatpush1.bf16.msra.mxu0 %v597
    %615 = vmatprep.subr.bf16.mxu0 0
    %616 = vmatpush1.bf16.msra.mxu0 %v596
    %617 = vmatprep.subr.bf16.mxu0 0
    %618 = vmatpush1.bf16.msra.mxu0 %v595
    %619 = vmatprep.subr.bf16.mxu0 0
    %620 = vmatpush2.bf16.msra.mxu0 0
    %621 = vmatprep.subr.bf16.mxu0 0
    %622 = vmatpush2.bf16.msra.mxu0 0
    %623 = vmatprep.subr.bf16.mxu0 0
    %624 = vmatpush2.bf16.msra.mxu0 0
    %625 = vmatprep.subr.bf16.mxu0 0
    %626 = vmatpush2.bf16.msra.mxu0 0
    %627 = vmatprep.subr.bf16.mxu0 0
    %628 = vmatpush2.bf16.msra.mxu0 0
    %629 = vmatprep.subr.bf16.mxu0 0
    %630 = vmatpush2.bf16.msra.mxu0 0
    %631 = vmatprep.subr.bf16.mxu0 0
    %632 = vmatpush2.bf16.msra.mxu0 0
    %633 = vmatprep.subr.bf16.mxu0 0
    %634 = vmatpush2.bf16.msra.mxu0 0
    %635 = vmatprep.mubr.bf16.mxu0 0
    %636 = vmatmul.mubr.bf16.gmra.mxu0 %v264
    %v637 = vpop.f32.mrf.mxu0
    %v638 = vadd.f32 0.0, %v637
    %v639 = vpop.f32.mrf.mxu0
    %v640 = vpop.f32.mrf.mxu0
    %v641 = vpop.f32.mrf.mxu0
    %642 = vdwg.mxu0
    %v643 = vmul.f32 %v638, 0.0001
    %v644 = vsub.f32 %v594, %v643
    %v645 = vmul.f32 %v644, %v644
    %646 = vadd.xlane.f32.xlu0 %v645
    %v647 = vpop.xlane.xlu0 %646
    %v648 = vadd.f32 %v647, 1e-12
    %v649 = vrsqrt.pop %v648
    %v650 = vmul.f32 %v644, %v649
    %651 = vmatprep.subr.mxu0 0.0
    %652 = vmatpush1.msra.mxu0 %v76
    %653 = vmatprep.subr.mxu0 0.0
    %654 = vmatpush1.msra.mxu0 %v75
    %655 = vmatprep.subr.mxu0 0.0
    %656 = vmatpush1.msra.mxu0 %v74
    %657 = vmatprep.subr.mxu0 0.0
    %658 = vmatpush1.msra.mxu0 %v73
    %659 = vmatprep.subr.mxu0 0.0
    %660 = vmatpush1.msra.mxu0 %v72
    %661 = vmatprep.subr.mxu0 0.0
    %662 = vmatpush1.msra.mxu0 %v71
    %663 = vmatprep.subr.mxu0 0.0
    %664 = vmatpush1.msra.mxu0 %v70
    %665 = vmatprep.subr.mxu0 0.0
    %666 = vmatpush1.msra.mxu0 %v69
    %667 = vmatprep.subr.mxu0 0.0
    %668 = vmatpush1.msra.mxu0 %v68
    %669 = vmatprep.subr.mxu0 0.0
    %670 = vmatpush1.msra.mxu0 %v67
    %671 = vmatprep.subr.mxu0 0.0
    %672 = vmatpush1.msra.mxu0 %v66
    %673 = vmatprep.subr.mxu0 0.0
    %674 = vmatpush1.msra.mxu0 %v65
    %675 = vmatprep.subr.mxu0 0.0
    %676 = vmatpush1.msra.mxu0 %v64
    %677 = vmatprep.subr.mxu0 0.0
    %678 = vmatpush1.msra.mxu0 %v63
    %679 = vmatprep.subr.mxu0 0.0
    %680 = vmatpush1.msra.mxu0 %v62
    %681 = vmatprep.subr.mxu0 0.0
    %682 = vmatpush1.msra.mxu0 %v61
    %683 = vmatprep.subr.mxu0 0.0
    %684 = vmatpush2.msra.mxu0 0.0
    %685 = vmatprep.subr.mxu0 0.0
    %686 = vmatpush2.msra.mxu0 0.0
    %687 = vmatprep.subr.mxu0 0.0
    %688 = vmatpush2.msra.mxu0 0.0
    %689 = vmatprep.subr.mxu0 0.0
    %690 = vmatpush2.msra.mxu0 0.0
    %691 = vmatprep.subr.mxu0 0.0
    %692 = vmatpush2.msra.mxu0 0.0
    %693 = vmatprep.subr.mxu0 0.0
    %694 = vmatpush2.msra.mxu0 0.0
    %695 = vmatprep.subr.mxu0 0.0
    %696 = vmatpush2.msra.mxu0 0.0
    %697 = vmatprep.subr.mxu0 0.0
    %698 = vmatpush2.msra.mxu0 0.0
    %699 = vmatprep.subr.mxu0 0.0
    %700 = vmatpush2.msra.mxu0 0.0
    %701 = vmatprep.subr.mxu0 0.0
    %702 = vmatpush2.msra.mxu0 0.0
    %703 = vmatprep.subr.mxu0 0.0
    %704 = vmatpush2.msra.mxu0 0.0
    %705 = vmatprep.subr.mxu0 0.0
    %706 = vmatpush2.msra.mxu0 0.0
    %707 = vmatprep.subr.mxu0 0.0
    %708 = vmatpush2.msra.mxu0 0.0
    %709 = vmatprep.subr.mxu0 0.0
    %710 = vmatpush2.msra.mxu0 0.0
    %711 = vmatprep.subr.mxu0 0.0
    %712 = vmatpush2.msra.mxu0 0.0
    %713 = vmatprep.subr.mxu0 0.0
    %714 = vmatpush2.msra.mxu0 0.0
    %715 = vmatprep.mubr.f32.mxu0 0.0
    %716 = vmatmul.mubr.f32.gmra.mxu0 %v650
    %v717 = vpop.f32.mrf.mxu0
    %v718 = vadd.f32 %v98, %v717
    %v719 = vpop.f32.mrf.mxu0
    %720 = vdwg.mxu0
    %v721 = vmax.f32 %v718, 0.0
    %722 = vmatprep.subr.mxu0 0.0
    %723 = vmatpush1.msra.mxu0 %v92
    %724 = vmatprep.subr.mxu0 0.0
    %725 = vmatpush1.msra.mxu0 %v91
    %726 = vmatprep.subr.mxu0 0.0
    %727 = vmatpush1.msra.mxu0 %v90
    %728 = vmatprep.subr.mxu0 0.0
    %729 = vmatpush1.msra.mxu0 %v89
    %730 = vmatprep.subr.mxu0 0.0
    %731 = vmatpush1.msra.mxu0 %v88
    %732 = vmatprep.subr.mxu0 0.0
    %733 = vmatpush1.msra.mxu0 %v87
    %734 = vmatprep.subr.mxu0 0.0
    %735 = vmatpush1.msra.mxu0 %v86
    %736 = vmatprep.subr.mxu0 0.0
    %737 = vmatpush1.msra.mxu0 %v85
    %738 = vmatprep.subr.mxu0 0.0
    %739 = vmatpush1.msra.mxu0 %v84
    %740 = vmatprep.subr.mxu0 0.0
    %741 = vmatpush1.msra.mxu0 %v83
    %742 = vmatprep.subr.mxu0 0.0
    %743 = vmatpush1.msra.mxu0 %v82
    %744 = vmatprep.subr.mxu0 0.0
    %745 = vmatpush1.msra.mxu0 %v81
    %746 = vmatprep.subr.mxu0 0.0
    %747 = vmatpush1.msra.mxu0 %v80
    %748 = vmatprep.subr.mxu0 0.0
    %749 = vmatpush1.msra.mxu0 %v79
    %750 = vmatprep.subr.mxu0 0.0
    %751 = vmatpush1.msra.mxu0 %v78
    %752 = vmatprep.subr.mxu0 0.0
    %753 = vmatpush1.msra.mxu0 %v77
    %754 = vmatprep.subr.mxu0 0.0
    %755 = vmatpush2.msra.mxu0 0.0
    %756 = vmatprep.subr.mxu0 0.0
    %757 = vmatpush2.msra.mxu0 0.0
    %758 = vmatprep.subr.mxu0 0.0
    %759 = vmatpush2.msra.mxu0 0.0
    %760 = vmatprep.subr.mxu0 0.0
    %761 = vmatpush2.msra.mxu0 0.0
    %762 = vmatprep.subr.mxu0 0.0
    %763 = vmatpush2.msra.mxu0 0.0
    %764 = vmatprep.subr.mxu0 0.0
    %765 = vmatpush2.msra.mxu0 0.0
    %766 = vmatprep.subr.mxu0 0.0
    %767 = vmatpush2.msra.mxu0 0.0
    %768 = vmatprep.subr.mxu0 0.0
    %769 = vmatpush2.msra.mxu0 0.0
    %770 = vmatprep.subr.mxu0 0.0
    %771 = vmatpush2.msra.mxu0 0.0
    %772 = vmatprep.subr.mxu0 0.0
    %773 = vmatpush2.msra.mxu0 0.0
    %774 = vmatprep.subr.mxu0 0.0
    %775 = vmatpush2.msra.mxu0 0.0
    %776 = vmatprep.subr.mxu0 0.0
    %777 = vmatpush2.msra.mxu0 0.0
    %778 = vmatprep.subr.mxu0 0.0
    %779 = vmatpush2.msra.mxu0 0.0
    %780 = vmatprep.subr.mxu0 0.0
    %781 = vmatpush2.msra.mxu0 0.0
    %782 = vmatprep.subr.mxu0 0.0
    %783 = vmatpush2.msra.mxu0 0.0
    %784 = vmatprep.subr.mxu0 0.0
    %785 = vmatpush2.msra.mxu0 0.0
    %786 = vmatprep.mubr.f32.mxu0 0.0
    %787 = vmatmul.mubr.f32.gmra.mxu0 %v721
    %v788 = vpop.f32.mrf.mxu0
    %v789 = vadd.f32 %v105, %v788
    %v790 = vpop.f32.mrf.mxu0
    %791 = vdwg.mxu0
    %792 = vmax.xlane.f32.xlu0 %v789
    %v793 = vpop.xlane.xlu0 %792
    %v794 = vsub.f32 %v789, %v793
    %v795 = vmul.f32 %v794, 1.442695
    %v796 = vpow.pop %v795
    %797 = vadd.xlane.f32.xlu0 %v796
    %v798 = vpop.xlane.xlu0 %797
    %v799 = vrcp.pop %v798
    %v800 = vmul.f32 %v796, %v799
    %v801 = vpack.c.bf16 %v650, %v650
    %v802 = vpack.c.bf16 %v800, %v800
    %803 = vxpose.xlu0.c.b16.start [1/8] %v801, 128
    %804 = vxpose.xlu0.c.b16.cont [2/8] 0, 128
    %805 = vxpose.xlu0.c.b16.cont [3/8] 0, 128
    %806 = vxpose.xlu0.c.b16.cont [4/8] 0, 128
    %807 = vxpose.xlu0.c.b16.cont [5/8] 0, 128
    %808 = vxpose.xlu0.c.b16.cont [6/8] 0, 128
    %809 = vxpose.xlu0.c.b16.cont [7/8] 0, 128
    %810 = vxpose.xlu0.c.b16.end [8/8] 0, 128
    %v811 = vpop.trf.xlu0
    %v812 = vpop.trf.xlu0
    %v813 = vpop.trf.xlu0
    %v814 = vpop.trf.xlu0
    %v815 = vpop.trf.xlu0
    %v816 = vpop.trf.xlu0
    %v817 = vpop.trf.xlu0
    %v818 = vpop.trf.xlu0
    %v820 = vsel %vm282, %v811, 0
    %v823 = vsel %vm282, %v812, 0
    %v826 = vsel %vm282, %v813, 0
    %v829 = vsel %vm282, %v814, 0
    %v832 = vsel %vm282, %v815, 0
    %v835 = vsel %vm282, %v816, 0
    %v838 = vsel %vm282, %v817, 0
    %v841 = vsel %vm282, %v818, 0
    %v844 = vsel %vm307, %v801, 0
    %846 = vmatprep.subr.bf16.mxu0 0
    %847 = vmatpush1.bf16.msra.mxu0 0
    %848 = vmatprep.subr.bf16.mxu0 0
    %849 = vmatpush1.bf16.msra.mxu0 0
    %850 = vmatprep.subr.bf16.mxu0 0
    %851 = vmatpush1.bf16.msra.mxu0 0
    %852 = vmatprep.subr.bf16.mxu0 0
    %853 = vmatpush1.bf16.msra.mxu0 0
    %854 = vmatprep.subr.bf16.mxu0 0
    %855 = vmatpush1.bf16.msra.mxu0 0
    %856 = vmatprep.subr.bf16.mxu0 0
    %857 = vmatpush1.bf16.msra.mxu0 0
    %858 = vmatprep.subr.bf16.mxu0 0
    %859 = vmatpush1.bf16.msra.mxu0 0
    %860 = vmatprep.subr.bf16.mxu0 0
    %861 = vmatpush1.bf16.msra.mxu0 %v844
    %862 = vmatprep.subr.bf16.mxu0 0
    %863 = vmatpush2.bf16.msra.mxu0 0
    %864 = vmatprep.subr.bf16.mxu0 0
    %865 = vmatpush2.bf16.msra.mxu0 0
    %866 = vmatprep.subr.bf16.mxu0 0
    %867 = vmatpush2.bf16.msra.mxu0 0
    %868 = vmatprep.subr.bf16.mxu0 0
    %869 = vmatpush2.bf16.msra.mxu0 0
    %870 = vmatprep.subr.bf16.mxu0 0
    %871 = vmatpush2.bf16.msra.mxu0 0
    %872 = vmatprep.subr.bf16.mxu0 0
    %873 = vmatpush2.bf16.msra.mxu0 0
    %874 = vmatprep.subr.bf16.mxu0 0
    %875 = vmatpush2.bf16.msra.mxu0 0
    %876 = vmatprep.subr.bf16.mxu0 0
    %877 = vmatpush2.bf16.msra.mxu0 0
    %878 = vmatprep.mubr.bf16.mxu0 0
    %879 = vmatmul.mubr.bf16.gmra.mxu0 %v820
    %v880 = vpop.f32.mrf.mxu0
    %v881 = vadd.f32 0.0, %v880
    %v882 = vpop.f32.mrf.mxu0
    %v883 = vpop.f32.mrf.mxu0
    %v884 = vadd.f32 0.0, %v883
    %v885 = vpop.f32.mrf.mxu0
    %886 = vmatprep.mubr.bf16.mxu0 0
    %887 = vmatmul.mubr.bf16.gmra.mxu0 %v823
    %v888 = vpop.f32.mrf.mxu0
    %v889 = vadd.f32 0.0, %v888
    %v890 = vpop.f32.mrf.mxu0
    %v891 = vpop.f32.mrf.mxu0
    %v892 = vadd.f32 0.0, %v891
    %v893 = vpop.f32.mrf.mxu0
    %894 = vmatprep.mubr.bf16.mxu0 0
    %895 = vmatmul.mubr.bf16.gmra.mxu0 %v826
    %v896 = vpop.f32.mrf.mxu0
    %v897 = vadd.f32 0.0, %v896
    %v898 = vpop.f32.mrf.mxu0
    %v899 = vpop.f32.mrf.mxu0
    %v900 = vadd.f32 0.0, %v899
    %v901 = vpop.f32.mrf.mxu0
    %902 = vmatprep.mubr.bf16.mxu0 0
    %903 = vmatmul.mubr.bf16.gmra.mxu0 %v829
    %v904 = vpop.f32.mrf.mxu0
    %v905 = vadd.f32 0.0, %v904
    %v906 = vpop.f32.mrf.mxu0
    %v907 = vpop.f32.mrf.mxu0
    %v908 = vadd.f32 0.0, %v907
    %v909 = vpop.f32.mrf.mxu0
    %910 = vmatprep.mubr.bf16.mxu0 0
    %911 = vmatmul.mubr.bf16.gmra.mxu0 %v832
    %v912 = vpop.f32.mrf.mxu0
    %v913 = vadd.f32 0.0, %v912
    %v914 = vpop.f32.mrf.mxu0
    %v915 = vpop.f32.mrf.mxu0
    %v916 = vadd.f32 0.0, %v915
    %v917 = vpop.f32.mrf.mxu0
    %918 = vmatprep.mubr.bf16.mxu0 0
    %919 = vmatmul.mubr.bf16.gmra.mxu0 %v835
    %v920 = vpop.f32.mrf.mxu0
    %v921 = vadd.f32 0.0, %v920
    %v922 = vpop.f32.mrf.mxu0
    %v923 = vpop.f32.mrf.mxu0
    %v924 = vadd.f32 0.0, %v923
    %v925 = vpop.f32.mrf.mxu0
    %926 = vmatprep.mubr.bf16.mxu0 0
    %927 = vmatmul.mubr.bf16.gmra.mxu0 %v838
    %v928 = vpop.f32.mrf.mxu0
    %v929 = vadd.f32 0.0, %v928
    %v930 = vpop.f32.mrf.mxu0
    %v931 = vpop.f32.mrf.mxu0
    %v932 = vadd.f32 0.0, %v931
    %v933 = vpop.f32.mrf.mxu0
    %934 = vmatprep.mubr.bf16.mxu0 0
    %935 = vmatmul.mubr.bf16.gmra.mxu0 %v841
    %v936 = vpop.f32.mrf.mxu0
    %v937 = vadd.f32 0.0, %v936
    %v938 = vpop.f32.mrf.mxu0
    %v939 = vpop.f32.mrf.mxu0
    %v940 = vadd.f32 0.0, %v939
    %v941 = vpop.f32.mrf.mxu0
    %942 = vdwg.mxu0
    %943 = vxpose.xlu0.c.b16.start [1/8] %v802, 128
    %944 = vxpose.xlu0.c.b16.cont [2/8] 0, 128
    %945 = vxpose.xlu0.c.b16.cont [3/8] 0, 128
    %946 = vxpose.xlu0.c.b16.cont [4/8] 0, 128
    %947 = vxpose.xlu0.c.b16.cont [5/8] 0, 128
    %948 = vxpose.xlu0.c.b16.cont [6/8] 0, 128
    %949 = vxpose.xlu0.c.b16.cont [7/8] 0, 128
    %950 = vxpose.xlu0.c.b16.end [8/8] 0, 128
    %v951 = vpop.trf.xlu0
    %v952 = vpop.trf.xlu0
    %v953 = vpop.trf.xlu0
    %v954 = vpop.trf.xlu0
    %v955 = vpop.trf.xlu0
    %v956 = vpop.trf.xlu0
    %v957 = vpop.trf.xlu0
    %v958 = vpop.trf.xlu0
    %v960 = vsel %vm282, %v951, 0
    %v963 = vsel %vm282, %v952, 0
    %v966 = vsel %vm282, %v953, 0
    %v969 = vsel %vm282, %v954, 0
    %v972 = vsel %vm282, %v955, 0
    %v975 = vsel %vm282, %v956, 0
    %v978 = vsel %vm282, %v957, 0
    %v981 = vsel %vm282, %v958, 0
    %983 = vmatprep.subr.bf16.mxu0 0
    %984 = vmatpush1.bf16.msra.mxu0 0
    %985 = vmatprep.subr.bf16.mxu0 0
    %986 = vmatpush1.bf16.msra.mxu0 0
    %987 = vmatprep.subr.bf16.mxu0 0
    %988 = vmatpush1.bf16.msra.mxu0 0
    %989 = vmatprep.subr.bf16.mxu0 0
    %990 = vmatpush1.bf16.msra.mxu0 0
    %991 = vmatprep.subr.bf16.mxu0 0
    %992 = vmatpush1.bf16.msra.mxu0 0
    %993 = vmatprep.subr.bf16.mxu0 0
    %994 = vmatpush1.bf16.msra.mxu0 0
    %995 = vmatprep.subr.bf16.mxu0 0
    %996 = vmatpush1.bf16.msra.mxu0 0
    %997 = vmatprep.subr.bf16.mxu0 0
    %998 = vmatpush1.bf16.msra.mxu0 %v844
    %999 = vmatprep.subr.bf16.mxu0 0
    %1000 = vmatpush2.bf16.msra.mxu0 0
    %1001 = vmatprep.subr.bf16.mxu0 0
    %1002 = vmatpush2.bf16.msra.mxu0 0
    %1003 = vmatprep.subr.bf16.mxu0 0
    %1004 = vmatpush2.bf16.msra.mxu0 0
    %1005 = vmatprep.subr.bf16.mxu0 0
    %1006 = vmatpush2.bf16.msra.mxu0 0
    %1007 = vmatprep.subr.bf16.mxu0 0
    %1008 = vmatpush2.bf16.msra.mxu0 0
    %1009 = vmatprep.subr.bf16.mxu0 0
    %1010 = vmatpush2.bf16.msra.mxu0 0
    %1011 = vmatprep.subr.bf16.mxu0 0
    %1012 = vmatpush2.bf16.msra.mxu0 0
    %1013 = vmatprep.subr.bf16.mxu0 0
    %1014 = vmatpush2.bf16.msra.mxu0 0
    %1015 = vmatprep.mubr.bf16.mxu0 0
    %1016 = vmatmul.mubr.bf16.gmra.mxu0 %v960
    %v1017 = vpop.f32.mrf.mxu0
    %v1018 = vadd.f32 0.0, %v1017
    %v1019 = vpop.f32.mrf.mxu0
    %v1020 = vpop.f32.mrf.mxu0
    %v1021 = vadd.f32 0.0, %v1020
    %v1022 = vpop.f32.mrf.mxu0
    %1023 = vmatprep.mubr.bf16.mxu0 0
    %1024 = vmatmul.mubr.bf16.gmra.mxu0 %v963
    %v1025 = vpop.f32.mrf.mxu0
    %v1026 = vadd.f32 0.0, %v1025
    %v1027 = vpop.f32.mrf.mxu0
    %v1028 = vpop.f32.mrf.mxu0
    %v1029 = vadd.f32 0.0, %v1028
    %v1030 = vpop.f32.mrf.mxu0
    %1031 = vmatprep.mubr.bf16.mxu0 0
    %1032 = vmatmul.mubr.bf16.gmra.mxu0 %v966
    %v1033 = vpop.f32.mrf.mxu0
    %v1034 = vadd.f32 0.0, %v1033
    %v1035 = vpop.f32.mrf.mxu0
    %v1036 = vpop.f32.mrf.mxu0
    %v1037 = vadd.f32 0.0, %v1036
    %v1038 = vpop.f32.mrf.mxu0
    %1039 = vmatprep.mubr.bf16.mxu0 0
    %1040 = vmatmul.mubr.bf16.gmra.mxu0 %v969
    %v1041 = vpop.f32.mrf.mxu0
    %v1042 = vadd.f32 0.0, %v1041
    %v1043 = vpop.f32.mrf.mxu0
    %v1044 = vpop.f32.mrf.mxu0
    %v1045 = vadd.f32 0.0, %v1044
    %v1046 = vpop.f32.mrf.mxu0
    %1047 = vmatprep.mubr.bf16.mxu0 0
    %1048 = vmatmul.mubr.bf16.gmra.mxu0 %v972
    %v1049 = vpop.f32.mrf.mxu0
    %v1050 = vadd.f32 0.0, %v1049
    %v1051 = vpop.f32.mrf.mxu0
    %v1052 = vpop.f32.mrf.mxu0
    %v1053 = vadd.f32 0.0, %v1052
    %v1054 = vpop.f32.mrf.mxu0
    %1055 = vmatprep.mubr.bf16.mxu0 0
    %1056 = vmatmul.mubr.bf16.gmra.mxu0 %v975
    %v1057 = vpop.f32.mrf.mxu0
    %v1058 = vadd.f32 0.0, %v1057
    %v1059 = vpop.f32.mrf.mxu0
    %v1060 = vpop.f32.mrf.mxu0
    %v1061 = vadd.f32 0.0, %v1060
    %v1062 = vpop.f32.mrf.mxu0
    %1063 = vmatprep.mubr.bf16.mxu0 0
    %1064 = vmatmul.mubr.bf16.gmra.mxu0 %v978
    %v1065 = vpop.f32.mrf.mxu0
    %v1066 = vadd.f32 0.0, %v1065
    %v1067 = vpop.f32.mrf.mxu0
    %v1068 = vpop.f32.mrf.mxu0
    %v1069 = vadd.f32 0.0, %v1068
    %v1070 = vpop.f32.mrf.mxu0
    %1071 = vmatprep.mubr.bf16.mxu0 0
    %1072 = vmatmul.mubr.bf16.gmra.mxu0 %v981
    %v1073 = vpop.f32.mrf.mxu0
    %v1074 = vadd.f32 0.0, %v1073
    %v1075 = vpop.f32.mrf.mxu0
    %v1076 = vpop.f32.mrf.mxu0
    %v1077 = vadd.f32 0.0, %v1076
    %v1078 = vpop.f32.mrf.mxu0
    %1079 = vdwg.mxu0
    %v1080 = vpack.c.bf16 %v1021, %v1018
    %v1081 = vpack.c.bf16 %v1029, %v1026
    %v1082 = vpack.c.bf16 %v1037, %v1034
    %v1083 = vpack.c.bf16 %v1045, %v1042
    %v1084 = vpack.c.bf16 %v1053, %v1050
    %v1085 = vpack.c.bf16 %v1061, %v1058
    %v1086 = vpack.c.bf16 %v1069, %v1066
    %v1087 = vpack.c.bf16 %v1077, %v1074
    %1088 = vmatprep.subr.bf16.mxu0 0
    %1089 = vmatpush1.bf16.msra.mxu0 %v1087
    %1090 = vmatprep.subr.bf16.mxu0 0
    %1091 = vmatpush1.bf16.msra.mxu0 %v1086
    %1092 = vmatprep.subr.bf16.mxu0 0
    %1093 = vmatpush1.bf16.msra.mxu0 %v1085
    %1094 = vmatprep.subr.bf16.mxu0 0
    %1095 = vmatpush1.bf16.msra.mxu0 %v1084
    %1096 = vmatprep.subr.bf16.mxu0 0
    %1097 = vmatpush1.bf16.msra.mxu0 %v1083
    %1098 = vmatprep.subr.bf16.mxu0 0
    %1099 = vmatpush1.bf16.msra.mxu0 %v1082
    %1100 = vmatprep.subr.bf16.mxu0 0
    %1101 = vmatpush1.bf16.msra.mxu0 %v1081
    %1102 = vmatprep.subr.bf16.mxu0 0
    %1103 = vmatpush1.bf16.msra.mxu0 %v1080
    %1104 = vmatprep.subr.bf16.mxu0 0
    %1105 = vmatpush2.bf16.msra.mxu0 0
    %1106 = vmatprep.subr.bf16.mxu0 0
    %1107 = vmatpush2.bf16.msra.mxu0 0
    %1108 = vmatprep.subr.bf16.mxu0 0
    %1109 = vmatpush2.bf16.msra.mxu0 0
    %1110 = vmatprep.subr.bf16.mxu0 0
    %1111 = vmatpush2.bf16.msra.mxu0 0
    %1112 = vmatprep.subr.bf16.mxu0 0
    %1113 = vmatpush2.bf16.msra.mxu0 0
    %1114 = vmatprep.subr.bf16.mxu0 0
    %1115 = vmatpush2.bf16.msra.mxu0 0
    %1116 = vmatprep.subr.bf16.mxu0 0
    %1117 = vmatpush2.bf16.msra.mxu0 0
    %1118 = vmatprep.subr.bf16.mxu0 0
    %1119 = vmatpush2.bf16.msra.mxu0 0
    %1120 = vmatprep.mubr.bf16.mxu0 0
    %1121 = vmatmul.mubr.bf16.gmra.mxu0 %v802
    %v1122 = vpop.f32.mrf.mxu0
    %v1123 = vadd.f32 0.0, %v1122
    %v1124 = vpop.f32.mrf.mxu0
    %v1125 = vpop.f32.mrf.mxu0
    %v1126 = vpop.f32.mrf.mxu0
    %1127 = vdwg.mxu0
    %v1128 = vmul.f32 %v1123, 0.0001
    %v1129 = vadd.f32 %v650, %v1128
    %v1130 = vpack.c.bf16 %v884, %v881
    %v1131 = vpack.c.bf16 %v892, %v889
    %v1132 = vpack.c.bf16 %v900, %v897
    %v1133 = vpack.c.bf16 %v908, %v905
    %v1134 = vpack.c.bf16 %v916, %v913
    %v1135 = vpack.c.bf16 %v924, %v921
    %v1136 = vpack.c.bf16 %v932, %v929
    %v1137 = vpack.c.bf16 %v940, %v937
    %1138 = vmatprep.subr.bf16.mxu0 0
    %1139 = vmatpush1.bf16.msra.mxu0 %v1137
    %1140 = vmatprep.subr.bf16.mxu0 0
    %1141 = vmatpush1.bf16.msra.mxu0 %v1136
    %1142 = vmatprep.subr.bf16.mxu0 0
    %1143 = vmatpush1.bf16.msra.mxu0 %v1135
    %1144 = vmatprep.subr.bf16.mxu0 0
    %1145 = vmatpush1.bf16.msra.mxu0 %v1134
    %1146 = vmatprep.subr.bf16.mxu0 0
    %1147 = vmatpush1.bf16.msra.mxu0 %v1133
    %1148 = vmatprep.subr.bf16.mxu0 0
    %1149 = vmatpush1.bf16.msra.mxu0 %v1132
    %1150 = vmatprep.subr.bf16.mxu0 0
    %1151 = vmatpush1.bf16.msra.mxu0 %v1131
    %1152 = vmatprep.subr.bf16.mxu0 0
    %1153 = vmatpush1.bf16.msra.mxu0 %v1130
    %1154 = vmatprep.subr.bf16.mxu0 0
    %1155 = vmatpush2.bf16.msra.mxu0 0
    %1156 = vmatprep.subr.bf16.mxu0 0
    %1157 = vmatpush2.bf16.msra.mxu0 0
    %1158 = vmatprep.subr.bf16.mxu0 0
    %1159 = vmatpush2.bf16.msra.mxu0 0
    %1160 = vmatprep.subr.bf16.mxu0 0
    %1161 = vmatpush2.bf16.msra.mxu0 0
    %1162 = vmatprep.subr.bf16.mxu0 0
    %1163 = vmatpush2.bf16.msra.mxu0 0
    %1164 = vmatprep.subr.bf16.mxu0 0
    %1165 = vmatpush2.bf16.msra.mxu0 0
    %1166 = vmatprep.subr.bf16.mxu0 0
    %1167 = vmatpush2.bf16.msra.mxu0 0
    %1168 = vmatprep.subr.bf16.mxu0 0
    %1169 = vmatpush2.bf16.msra.mxu0 0
    %1170 = vmatprep.mubr.bf16.mxu0 0
    %1171 = vmatmul.mubr.bf16.gmra.mxu0 %v801
    %v1172 = vpop.f32.mrf.mxu0
    %v1173 = vadd.f32 0.0, %v1172
    %v1174 = vpop.f32.mrf.mxu0
    %v1175 = vpop.f32.mrf.mxu0
    %v1176 = vpop.f32.mrf.mxu0
    %1177 = vdwg.mxu0
    %v1178 = vmul.f32 %v1173, 0.0001
    %v1179 = vsub.f32 %v1129, %v1178
    %v1180 = vmul.f32 %v1179, %v1179
    %1181 = vadd.xlane.f32.xlu0 %v1180
    %v1182 = vpop.xlane.xlu0 %1181
    %v1183 = vadd.f32 %v1182, 1e-12
    %v1184 = vrsqrt.pop %v1183
    %v1185 = vmul.f32 %v1179, %v1184
    %1186 = vmatprep.subr.mxu0 0.0
    %1187 = vmatpush1.msra.mxu0 %v76
    %1188 = vmatprep.subr.mxu0 0.0
    %1189 = vmatpush1.msra.mxu0 %v75
    %1190 = vmatprep.subr.mxu0 0.0
    %1191 = vmatpush1.msra.mxu0 %v74
    %1192 = vmatprep.subr.mxu0 0.0
    %1193 = vmatpush1.msra.mxu0 %v73
    %1194 = vmatprep.subr.mxu0 0.0
    %1195 = vmatpush1.msra.mxu0 %v72
    %1196 = vmatprep.subr.mxu0 0.0
    %1197 = vmatpush1.msra.mxu0 %v71
    %1198 = vmatprep.subr.mxu0 0.0
    %1199 = vmatpush1.msra.mxu0 %v70
    %1200 = vmatprep.subr.mxu0 0.0
    %1201 = vmatpush1.msra.mxu0 %v69
    %1202 = vmatprep.subr.mxu0 0.0
    %1203 = vmatpush1.msra.mxu0 %v68
    %1204 = vmatprep.subr.mxu0 0.0
    %1205 = vmatpush1.msra.mxu0 %v67
    %1206 = vmatprep.subr.mxu0 0.0
    %1207 = vmatpush1.msra.mxu0 %v66
    %1208 = vmatprep.subr.mxu0 0.0
    %1209 = vmatpush1.msra.mxu0 %v65
    %1210 = vmatprep.subr.mxu0 0.0
    %1211 = vmatpush1.msra.mxu0 %v64
    %1212 = vmatprep.subr.mxu0 0.0
    %1213 = vmatpush1.msra.mxu0 %v63
    %1214 = vmatprep.subr.mxu0 0.0
    %1215 = vmatpush1.msra.mxu0 %v62
    %1216 = vmatprep.subr.mxu0 0.0
    %1217 = vmatpush1.msra.mxu0 %v61
    %1218 = vmatprep.subr.mxu0 0.0
    %1219 = vmatpush2.msra.mxu0 0.0
    %1220 = vmatprep.subr.mxu0 0.0
    %1221 = vmatpush2.msra.mxu0 0.0
    %1222 = vmatprep.subr.mxu0 0.0
    %1223 = vmatpush2.msra.mxu0 0.0
    %1224 = vmatprep.subr.mxu0 0.0
    %1225 = vmatpush2.msra.mxu0 0.0
    %1226 = vmatprep.subr.mxu0 0.0
    %1227 = vmatpush2.msra.mxu0 0.0
    %1228 = vmatprep.subr.mxu0 0.0
    %1229 = vmatpush2.msra.mxu0 0.0
    %1230 = vmatprep.subr.mxu0 0.0
    %1231 = vmatpush2.msra.mxu0 0.0
    %1232 = vmatprep.subr.mxu0 0.0
    %1233 = vmatpush2.msra.mxu0 0.0
    %1234 = vmatprep.subr.mxu0 0.0
    %1235 = vmatpush2.msra.mxu0 0.0
    %1236 = vmatprep.subr.mxu0 0.0
    %1237 = vmatpush2.msra.mxu0 0.0
    %1238 = vmatprep.subr.mxu0 0.0
    %1239 = vmatpush2.msra.mxu0 0.0
    %1240 = vmatprep.subr.mxu0 0.0
    %1241 = vmatpush2.msra.mxu0 0.0
    %1242 = vmatprep.subr.mxu0 0.0
    %1243 = vmatpush2.msra.mxu0 0.0
    %1244 = vmatprep.subr.mxu0 0.0
    %1245 = vmatpush2.msra.mxu0 0.0
    %1246 = vmatprep.subr.mxu0 0.0
    %1247 = vmatpush2.msra.mxu0 0.0
    %1248 = vmatprep.subr.mxu0 0.0
    %1249 = vmatpush2.msra.mxu0 0.0
    %1250 = vmatprep.mubr.f32.mxu0 0.0
    %1251 = vmatmul.mubr.f32.gmra.mxu0 %v1185
    %v1252 = vpop.f32.mrf.mxu0
    %v1253 = vadd.f32 %v98, %v1252
    %v1254 = vpop.f32.mrf.mxu0
    %1255 = vdwg.mxu0
    %v1256 = vmax.f32 %v1253, 0.0
    %1257 = vmatprep.subr.mxu0 0.0
    %1258 = vmatpush1.msra.mxu0 %v92
    %1259 = vmatprep.subr.mxu0 0.0
    %1260 = vmatpush1.msra.mxu0 %v91
    %1261 = vmatprep.subr.mxu0 0.0
    %1262 = vmatpush1.msra.mxu0 %v90
    %1263 = vmatprep.subr.mxu0 0.0
    %1264 = vmatpush1.msra.mxu0 %v89
    %1265 = vmatprep.subr.mxu0 0.0
    %1266 = vmatpush1.msra.mxu0 %v88
    %1267 = vmatprep.subr.mxu0 0.0
    %1268 = vmatpush1.msra.mxu0 %v87
    %1269 = vmatprep.subr.mxu0 0.0
    %1270 = vmatpush1.msra.mxu0 %v86
    %1271 = vmatprep.subr.mxu0 0.0
    %1272 = vmatpush1.msra.mxu0 %v85
    %1273 = vmatprep.subr.mxu0 0.0
    %1274 = vmatpush1.msra.mxu0 %v84
    %1275 = vmatprep.subr.mxu0 0.0
    %1276 = vmatpush1.msra.mxu0 %v83
    %1277 = vmatprep.subr.mxu0 0.0
    %1278 = vmatpush1.msra.mxu0 %v82
    %1279 = vmatprep.subr.mxu0 0.0
    %1280 = vmatpush1.msra.mxu0 %v81
    %1281 = vmatprep.subr.mxu0 0.0
    %1282 = vmatpush1.msra.mxu0 %v80
    %1283 = vmatprep.subr.mxu0 0.0
    %1284 = vmatpush1.msra.mxu0 %v79
    %1285 = vmatprep.subr.mxu0 0.0
    %1286 = vmatpush1.msra.mxu0 %v78
    %1287 = vmatprep.subr.mxu0 0.0
    %1288 = vmatpush1.msra.mxu0 %v77
    %1289 = vmatprep.subr.mxu0 0.0
    %1290 = vmatpush2.msra.mxu0 0.0
    %1291 = vmatprep.subr.mxu0 0.0
    %1292 = vmatpush2.msra.mxu0 0.0
    %1293 = vmatprep.subr.mxu0 0.0
    %1294 = vmatpush2.msra.mxu0 0.0
    %1295 = vmatprep.subr.mxu0 0.0
    %1296 = vmatpush2.msra.mxu0 0.0
    %1297 = vmatprep.subr.mxu0 0.0
    %1298 = vmatpush2.msra.mxu0 0.0
    %1299 = vmatprep.subr.mxu0 0.0
    %1300 = vmatpush2.msra.mxu0 0.0
    %1301 = vmatprep.subr.mxu0 0.0
    %1302 = vmatpush2.msra.mxu0 0.0
    %1303 = vmatprep.subr.mxu0 0.0
    %1304 = vmatpush2.msra.mxu0 0.0
    %1305 = vmatprep.subr.mxu0 0.0
    %1306 = vmatpush2.msra.mxu0 0.0
    %1307 = vmatprep.subr.mxu0 0.0
    %1308 = vmatpush2.msra.mxu0 0.0
    %1309 = vmatprep.subr.mxu0 0.0
    %1310 = vmatpush2.msra.mxu0 0.0
    %1311 = vmatprep.subr.mxu0 0.0
    %1312 = vmatpush2.msra.mxu0 0.0
    %1313 = vmatprep.subr.mxu0 0.0
    %1314 = vmatpush2.msra.mxu0 0.0
    %1315 = vmatprep.subr.mxu0 0.0
    %1316 = vmatpush2.msra.mxu0 0.0
    %1317 = vmatprep.subr.mxu0 0.0
    %1318 = vmatpush2.msra.mxu0 0.0
    %1319 = vmatprep.subr.mxu0 0.0
    %1320 = vmatpush2.msra.mxu0 0.0
    %1321 = vmatprep.mubr.f32.mxu0 0.0
    %1322 = vmatmul.mubr.f32.gmra.mxu0 %v1256
    %v1323 = vpop.f32.mrf.mxu0
    %v1324 = vadd.f32 %v105, %v1323
    %v1325 = vpop.f32.mrf.mxu0
    %1326 = vdwg.mxu0
    %1327 = vmax.xlane.f32.xlu0 %v1324
    %v1328 = vpop.xlane.xlu0 %1327
    %v1329 = vsub.f32 %v1324, %v1328
    %v1330 = vmul.f32 %v1329, 1.442695
    %v1331 = vpow.pop %v1330
    %1332 = vadd.xlane.f32.xlu0 %v1331
    %v1333 = vpop.xlane.xlu0 %1332
    %v1334 = vrcp.pop %v1333
    %v1335 = vmul.f32 %v1331, %v1334
    %v1336 = vpack.c.bf16 %v1185, %v1185
    %v1337 = vpack.c.bf16 %v1335, %v1335
    %1338 = vxpose.xlu0.c.b16.start [1/8] %v1336, 128
    %1339 = vxpose.xlu0.c.b16.cont [2/8] 0, 128
    %1340 = vxpose.xlu0.c.b16.cont [3/8] 0, 128
    %1341 = vxpose.xlu0.c.b16.cont [4/8] 0, 128
    %1342 = vxpose.xlu0.c.b16.cont [5/8] 0, 128
    %1343 = vxpose.xlu0.c.b16.cont [6/8] 0, 128
    %1344 = vxpose.xlu0.c.b16.cont [7/8] 0, 128
    %1345 = vxpose.xlu0.c.b16.end [8/8] 0, 128
    %v1346 = vpop.trf.xlu0
    %v1347 = vpop.trf.xlu0
    %v1348 = vpop.trf.xlu0
    %v1349 = vpop.trf.xlu0
    %v1350 = vpop.trf.xlu0
    %v1351 = vpop.trf.xlu0
    %v1352 = vpop.trf.xlu0
    %v1353 = vpop.trf.xlu0
    %v1355 = vsel %vm282, %v1346, 0
    %v1358 = vsel %vm282, %v1347, 0
    %v1361 = vsel %vm282, %v1348, 0
    %v1364 = vsel %vm282, %v1349, 0
    %v1367 = vsel %vm282, %v1350, 0
    %v1370 = vsel %vm282, %v1351, 0
    %v1373 = vsel %vm282, %v1352, 0
    %v1376 = vsel %vm282, %v1353, 0
    %v1379 = vsel %vm307, %v1336, 0
    %1381 = vmatprep.subr.bf16.mxu0 0
    %1382 = vmatpush1.bf16.msra.mxu0 0
    %1383 = vmatprep.subr.bf16.mxu0 0
    %1384 = vmatpush1.bf16.msra.mxu0 0
    %1385 = vmatprep.subr.bf16.mxu0 0
    %1386 = vmatpush1.bf16.msra.mxu0 0
    %1387 = vmatprep.subr.bf16.mxu0 0
    %1388 = vmatpush1.bf16.msra.mxu0 0
    %1389 = vmatprep.subr.bf16.mxu0 0
    %1390 = vmatpush1.bf16.msra.mxu0 0
    %1391 = vmatprep.subr.bf16.mxu0 0
    %1392 = vmatpush1.bf16.msra.mxu0 0
    %1393 = vmatprep.subr.bf16.mxu0 0
    %1394 = vmatpush1.bf16.msra.mxu0 0
    %1395 = vmatprep.subr.bf16.mxu0 0
    %1396 = vmatpush1.bf16.msra.mxu0 %v1379
    %1397 = vmatprep.subr.bf16.mxu0 0
    %1398 = vmatpush2.bf16.msra.mxu0 0
    %1399 = vmatprep.subr.bf16.mxu0 0
    %1400 = vmatpush2.bf16.msra.mxu0 0
    %1401 = vmatprep.subr.bf16.mxu0 0
    %1402 = vmatpush2.bf16.msra.mxu0 0
    %1403 = vmatprep.subr.bf16.mxu0 0
    %1404 = vmatpush2.bf16.msra.mxu0 0
    %1405 = vmatprep.subr.bf16.mxu0 0
    %1406 = vmatpush2.bf16.msra.mxu0 0
    %1407 = vmatprep.subr.bf16.mxu0 0
    %1408 = vmatpush2.bf16.msra.mxu0 0
    %1409 = vmatprep.subr.bf16.mxu0 0
    %1410 = vmatpush2.bf16.msra.mxu0 0
    %1411 = vmatprep.subr.bf16.mxu0 0
    %1412 = vmatpush2.bf16.msra.mxu0 0
    %1413 = vmatprep.mubr.bf16.mxu0 0
    %1414 = vmatmul.mubr.bf16.gmra.mxu0 %v1355
    %v1415 = vpop.f32.mrf.mxu0
    %v1416 = vadd.f32 0.0, %v1415
    %v1417 = vpop.f32.mrf.mxu0
    %v1418 = vpop.f32.mrf.mxu0
    %v1419 = vadd.f32 0.0, %v1418
    %v1420 = vpop.f32.mrf.mxu0
    %1421 = vmatprep.mubr.bf16.mxu0 0
    %1422 = vmatmul.mubr.bf16.gmra.mxu0 %v1358
    %v1423 = vpop.f32.mrf.mxu0
    %v1424 = vadd.f32 0.0, %v1423
    %v1425 = vpop.f32.mrf.mxu0
    %v1426 = vpop.f32.mrf.mxu0
    %v1427 = vadd.f32 0.0, %v1426
    %v1428 = vpop.f32.mrf.mxu0
    %1429 = vmatprep.mubr.bf16.mxu0 0
    %1430 = vmatmul.mubr.bf16.gmra.mxu0 %v1361
    %v1431 = vpop.f32.mrf.mxu0
    %v1432 = vadd.f32 0.0, %v1431
    %v1433 = vpop.f32.mrf.mxu0
    %v1434 = vpop.f32.mrf.mxu0
    %v1435 = vadd.f32 0.0, %v1434
    %v1436 = vpop.f32.mrf.mxu0
    %1437 = vmatprep.mubr.bf16.mxu0 0
    %1438 = vmatmul.mubr.bf16.gmra.mxu0 %v1364
    %v1439 = vpop.f32.mrf.mxu0
    %v1440 = vadd.f32 0.0, %v1439
    %v1441 = vpop.f32.mrf.mxu0
    %v1442 = vpop.f32.mrf.mxu0
    %v1443 = vadd.f32 0.0, %v1442
    %v1444 = vpop.f32.mrf.mxu0
    %1445 = vmatprep.mubr.bf16.mxu0 0
    %1446 = vmatmul.mubr.bf16.gmra.mxu0 %v1367
    %v1447 = vpop.f32.mrf.mxu0
    %v1448 = vadd.f32 0.0, %v1447
    %v1449 = vpop.f32.mrf.mxu0
    %v1450 = vpop.f32.mrf.mxu0
    %v1451 = vadd.f32 0.0, %v1450
    %v1452 = vpop.f32.mrf.mxu0
    %1453 = vmatprep.mubr.bf16.mxu0 0
    %1454 = vmatmul.mubr.bf16.gmra.mxu0 %v1370
    %v1455 = vpop.f32.mrf.mxu0
    %v1456 = vadd.f32 0.0, %v1455
    %v1457 = vpop.f32.mrf.mxu0
    %v1458 = vpop.f32.mrf.mxu0
    %v1459 = vadd.f32 0.0, %v1458
    %v1460 = vpop.f32.mrf.mxu0
    %1461 = vmatprep.mubr.bf16.mxu0 0
    %1462 = vmatmul.mubr.bf16.gmra.mxu0 %v1373
    %v1463 = vpop.f32.mrf.mxu0
    %v1464 = vadd.f32 0.0, %v1463
    %v1465 = vpop.f32.mrf.mxu0
    %v1466 = vpop.f32.mrf.mxu0
    %v1467 = vadd.f32 0.0, %v1466
    %v1468 = vpop.f32.mrf.mxu0
    %1469 = vmatprep.mubr.bf16.mxu0 0
    %1470 = vmatmul.mubr.bf16.gmra.mxu0 %v1376
    %v1471 = vpop.f32.mrf.mxu0
    %v1472 = vadd.f32 0.0, %v1471
    %v1473 = vpop.f32.mrf.mxu0
    %v1474 = vpop.f32.mrf.mxu0
    %v1475 = vadd.f32 0.0, %v1474
    %v1476 = vpop.f32.mrf.mxu0
    %1477 = vdwg.mxu0
    %1478 = vxpose.xlu0.c.b16.start [1/8] %v1337, 128
    %1479 = vxpose.xlu0.c.b16.cont [2/8] 0, 128
    %1480 = vxpose.xlu0.c.b16.cont [3/8] 0, 128
    %1481 = vxpose.xlu0.c.b16.cont [4/8] 0, 128
    %1482 = vxpose.xlu0.c.b16.cont [5/8] 0, 128
    %1483 = vxpose.xlu0.c.b16.cont [6/8] 0, 128
    %1484 = vxpose.xlu0.c.b16.cont [7/8] 0, 128
    %1485 = vxpose.xlu0.c.b16.end [8/8] 0, 128
    %v1486 = vpop.trf.xlu0
    %v1487 = vpop.trf.xlu0
    %v1488 = vpop.trf.xlu0
    %v1489 = vpop.trf.xlu0
    %v1490 = vpop.trf.xlu0
    %v1491 = vpop.trf.xlu0
    %v1492 = vpop.trf.xlu0
    %v1493 = vpop.trf.xlu0
    %v1495 = vsel %vm282, %v1486, 0
    %v1498 = vsel %vm282, %v1487, 0
    %v1501 = vsel %vm282, %v1488, 0
    %v1504 = vsel %vm282, %v1489, 0
    %v1507 = vsel %vm282, %v1490, 0
    %v1510 = vsel %vm282, %v1491, 0
    %v1513 = vsel %vm282, %v1492, 0
    %v1516 = vsel %vm282, %v1493, 0
    %1518 = vmatprep.subr.bf16.mxu0 0
    %1519 = vmatpush1.bf16.msra.mxu0 0
    %1520 = vmatprep.subr.bf16.mxu0 0
    %1521 = vmatpush1.bf16.msra.mxu0 0
    %1522 = vmatprep.subr.bf16.mxu0 0
    %1523 = vmatpush1.bf16.msra.mxu0 0
    %1524 = vmatprep.subr.bf16.mxu0 0
    %1525 = vmatpush1.bf16.msra.mxu0 0
    %1526 = vmatprep.subr.bf16.mxu0 0
    %1527 = vmatpush1.bf16.msra.mxu0 0
    %1528 = vmatprep.subr.bf16.mxu0 0
    %1529 = vmatpush1.bf16.msra.mxu0 0
    %1530 = vmatprep.subr.bf16.mxu0 0
    %1531 = vmatpush1.bf16.msra.mxu0 0
    %1532 = vmatprep.subr.bf16.mxu0 0
    %1533 = vmatpush1.bf16.msra.mxu0 %v1379
    %1534 = vmatprep.subr.bf16.mxu0 0
    %1535 = vmatpush2.bf16.msra.mxu0 0
    %1536 = vmatprep.subr.bf16.mxu0 0
    %1537 = vmatpush2.bf16.msra.mxu0 0
    %1538 = vmatprep.subr.bf16.mxu0 0
    %1539 = vmatpush2.bf16.msra.mxu0 0
    %1540 = vmatprep.subr.bf16.mxu0 0
    %1541 = vmatpush2.bf16.msra.mxu0 0
    %1542 = vmatprep.subr.bf16.mxu0 0
    %1543 = vmatpush2.bf16.msra.mxu0 0
    %1544 = vmatprep.subr.bf16.mxu0 0
    %1545 = vmatpush2.bf16.msra.mxu0 0
    %1546 = vmatprep.subr.bf16.mxu0 0
    %1547 = vmatpush2.bf16.msra.mxu0 0
    %1548 = vmatprep.subr.bf16.mxu0 0
    %1549 = vmatpush2.bf16.msra.mxu0 0
    %1550 = vmatprep.mubr.bf16.mxu0 0
    %1551 = vmatmul.mubr.bf16.gmra.mxu0 %v1495
    %v1552 = vpop.f32.mrf.mxu0
    %v1553 = vadd.f32 0.0, %v1552
    %v1554 = vpop.f32.mrf.mxu0
    %v1555 = vpop.f32.mrf.mxu0
    %v1556 = vadd.f32 0.0, %v1555
    %v1557 = vpop.f32.mrf.mxu0
    %1558 = vmatprep.mubr.bf16.mxu0 0
    %1559 = vmatmul.mubr.bf16.gmra.mxu0 %v1498
    %v1560 = vpop.f32.mrf.mxu0
    %v1561 = vadd.f32 0.0, %v1560
    %v1562 = vpop.f32.mrf.mxu0
    %v1563 = vpop.f32.mrf.mxu0
    %v1564 = vadd.f32 0.0, %v1563
    %v1565 = vpop.f32.mrf.mxu0
    %1566 = vmatprep.mubr.bf16.mxu0 0
    %1567 = vmatmul.mubr.bf16.gmra.mxu0 %v1501
    %v1568 = vpop.f32.mrf.mxu0
    %v1569 = vadd.f32 0.0, %v1568
    %v1570 = vpop.f32.mrf.mxu0
    %v1571 = vpop.f32.mrf.mxu0
    %v1572 = vadd.f32 0.0, %v1571
    %v1573 = vpop.f32.mrf.mxu0
    %1574 = vmatprep.mubr.bf16.mxu0 0
    %1575 = vmatmul.mubr.bf16.gmra.mxu0 %v1504
    %v1576 = vpop.f32.mrf.mxu0
    %v1577 = vadd.f32 0.0, %v1576
    %v1578 = vpop.f32.mrf.mxu0
    %v1579 = vpop.f32.mrf.mxu0
    %v1580 = vadd.f32 0.0, %v1579
    %v1581 = vpop.f32.mrf.mxu0
    %1582 = vmatprep.mubr.bf16.mxu0 0
    %1583 = vmatmul.mubr.bf16.gmra.mxu0 %v1507
    %v1584 = vpop.f32.mrf.mxu0
    %v1585 = vadd.f32 0.0, %v1584
    %v1586 = vpop.f32.mrf.mxu0
    %v1587 = vpop.f32.mrf.mxu0
    %v1588 = vadd.f32 0.0, %v1587
    %v1589 = vpop.f32.mrf.mxu0
    %1590 = vmatprep.mubr.bf16.mxu0 0
    %1591 = vmatmul.mubr.bf16.gmra.mxu0 %v1510
    %v1592 = vpop.f32.mrf.mxu0
    %v1593 = vadd.f32 0.0, %v1592
    %v1594 = vpop.f32.mrf.mxu0
    %v1595 = vpop.f32.mrf.mxu0
    %v1596 = vadd.f32 0.0, %v1595
    %v1597 = vpop.f32.mrf.mxu0
    %1598 = vmatprep.mubr.bf16.mxu0 0
    %1599 = vmatmul.mubr.bf16.gmra.mxu0 %v1513
    %v1600 = vpop.f32.mrf.mxu0
    %v1601 = vadd.f32 0.0, %v1600
    %v1602 = vpop.f32.mrf.mxu0
    %v1603 = vpop.f32.mrf.mxu0
    %v1604 = vadd.f32 0.0, %v1603
    %v1605 = vpop.f32.mrf.mxu0
    %1606 = vmatprep.mubr.bf16.mxu0 0
    %1607 = vmatmul.mubr.bf16.gmra.mxu0 %v1516
    %v1608 = vpop.f32.mrf.mxu0
    %v1609 = vadd.f32 0.0, %v1608
    %v1610 = vpop.f32.mrf.mxu0
    %v1611 = vpop.f32.mrf.mxu0
    %v1612 = vadd.f32 0.0, %v1611
    %v1613 = vpop.f32.mrf.mxu0
    %1614 = vdwg.mxu0
    %v1615 = vpack.c.bf16 %v1556, %v1553
    %v1616 = vpack.c.bf16 %v1564, %v1561
    %v1617 = vpack.c.bf16 %v1572, %v1569
    %v1618 = vpack.c.bf16 %v1580, %v1577
    %v1619 = vpack.c.bf16 %v1588, %v1585
    %v1620 = vpack.c.bf16 %v1596, %v1593
    %v1621 = vpack.c.bf16 %v1604, %v1601
    %v1622 = vpack.c.bf16 %v1612, %v1609
    %1623 = vmatprep.subr.bf16.mxu0 0
    %1624 = vmatpush1.bf16.msra.mxu0 %v1622
    %1625 = vmatprep.subr.bf16.mxu0 0
    %1626 = vmatpush1.bf16.msra.mxu0 %v1621
    %1627 = vmatprep.subr.bf16.mxu0 0
    %1628 = vmatpush1.bf16.msra.mxu0 %v1620
    %1629 = vmatprep.subr.bf16.mxu0 0
    %1630 = vmatpush1.bf16.msra.mxu0 %v1619
    %1631 = vmatprep.subr.bf16.mxu0 0
    %1632 = vmatpush1.bf16.msra.mxu0 %v1618
    %1633 = vmatprep.subr.bf16.mxu0 0
    %1634 = vmatpush1.bf16.msra.mxu0 %v1617
    %1635 = vmatprep.subr.bf16.mxu0 0
    %1636 = vmatpush1.bf16.msra.mxu0 %v1616
    %1637 = vmatprep.subr.bf16.mxu0 0
    %1638 = vmatpush1.bf16.msra.mxu0 %v1615
    %1639 = vmatprep.subr.bf16.mxu0 0
    %1640 = vmatpush2.bf16.msra.mxu0 0
    %1641 = vmatprep.subr.bf16.mxu0 0
    %1642 = vmatpush2.bf16.msra.mxu0 0
    %1643 = vmatprep.subr.bf16.mxu0 0
    %1644 = vmatpush2.bf16.msra.mxu0 0
    %1645 = vmatprep.subr.bf16.mxu0 0
    %1646 = vmatpush2.bf16.msra.mxu0 0
    %1647 = vmatprep.subr.bf16.mxu0 0
    %1648 = vmatpush2.bf16.msra.mxu0 0
    %1649 = vmatprep.subr.bf16.mxu0 0
    %1650 = vmatpush2.bf16.msra.mxu0 0
    %1651 = vmatprep.subr.bf16.mxu0 0
    %1652 = vmatpush2.bf16.msra.mxu0 0
    %1653 = vmatprep.subr.bf16.mxu0 0
    %1654 = vmatpush2.bf16.msra.mxu0 0
    %1655 = vmatprep.mubr.bf16.mxu0 0
    %1656 = vmatmul.mubr.bf16.gmra.mxu0 %v1337
    %v1657 = vpop.f32.mrf.mxu0
    %v1658 = vadd.f32 0.0, %v1657
    %v1659 = vpop.f32.mrf.mxu0
    %v1660 = vpop.f32.mrf.mxu0
    %v1661 = vpop.f32.mrf.mxu0
    %1662 = vdwg.mxu0
    %v1663 = vmul.f32 %v1658, 0.0001
    %v1664 = vadd.f32 %v1185, %v1663
    %v1665 = vpack.c.bf16 %v1419, %v1416
    %v1666 = vpack.c.bf16 %v1427, %v1424
    %v1667 = vpack.c.bf16 %v1435, %v1432
    %v1668 = vpack.c.bf16 %v1443, %v1440
    %v1669 = vpack.c.bf16 %v1451, %v1448
    %v1670 = vpack.c.bf16 %v1459, %v1456
    %v1671 = vpack.c.bf16 %v1467, %v1464
    %v1672 = vpack.c.bf16 %v1475, %v1472
    %1673 = vmatprep.subr.bf16.mxu0 0
    %1674 = vmatpush1.bf16.msra.mxu0 %v1672
    %1675 = vmatprep.subr.bf16.mxu0 0
    %1676 = vmatpush1.bf16.msra.mxu0 %v1671
    %1677 = vmatprep.subr.bf16.mxu0 0
    %1678 = vmatpush1.bf16.msra.mxu0 %v1670
    %1679 = vmatprep.subr.bf16.mxu0 0
    %1680 = vmatpush1.bf16.msra.mxu0 %v1669
    %1681 = vmatprep.subr.bf16.mxu0 0
    %1682 = vmatpush1.bf16.msra.mxu0 %v1668
    %1683 = vmatprep.subr.bf16.mxu0 0
    %1684 = vmatpush1.bf16.msra.mxu0 %v1667
    %1685 = vmatprep.subr.bf16.mxu0 0
    %1686 = vmatpush1.bf16.msra.mxu0 %v1666
    %1687 = vmatprep.subr.bf16.mxu0 0
    %1688 = vmatpush1.bf16.msra.mxu0 %v1665
    %1689 = vmatprep.subr.bf16.mxu0 0
    %1690 = vmatpush2.bf16.msra.mxu0 0
    %1691 = vmatprep.subr.bf16.mxu0 0
    %1692 = vmatpush2.bf16.msra.mxu0 0
    %1693 = vmatprep.subr.bf16.mxu0 0
    %1694 = vmatpush2.bf16.msra.mxu0 0
    %1695 = vmatprep.subr.bf16.mxu0 0
    %1696 = vmatpush2.bf16.msra.mxu0 0
    %1697 = vmatprep.subr.bf16.mxu0 0
    %1698 = vmatpush2.bf16.msra.mxu0 0
    %1699 = vmatprep.subr.bf16.mxu0 0
    %1700 = vmatpush2.bf16.msra.mxu0 0
    %1701 = vmatprep.subr.bf16.mxu0 0
    %1702 = vmatpush2.bf16.msra.mxu0 0
    %1703 = vmatprep.subr.bf16.mxu0 0
    %1704 = vmatpush2.bf16.msra.mxu0 0
    %1705 = vmatprep.mubr.bf16.mxu0 0
    %1706 = vmatmul.mubr.bf16.gmra.mxu0 %v1336
    %v1707 = vpop.f32.mrf.mxu0
    %v1708 = vadd.f32 0.0, %v1707
    %v1709 = vpop.f32.mrf.mxu0
    %v1710 = vpop.f32.mrf.mxu0
    %v1711 = vpop.f32.mrf.mxu0
    %1712 = vdwg.mxu0
    %v1713 = vmul.f32 %v1708, 0.0001
    %v1714 = vsub.f32 %v1664, %v1713
    %1715 = vmatprep.subr.mxu0 0.0
    %1716 = vmatpush1.msra.mxu0 %v76
    %1717 = vmatprep.subr.mxu0 0.0
    %1718 = vmatpush1.msra.mxu0 %v75
    %1719 = vmatprep.subr.mxu0 0.0
    %1720 = vmatpush1.msra.mxu0 %v74
    %1721 = vmatprep.subr.mxu0 0.0
    %1722 = vmatpush1.msra.mxu0 %v73
    %1723 = vmatprep.subr.mxu0 0.0
    %1724 = vmatpush1.msra.mxu0 %v72
    %1725 = vmatprep.subr.mxu0 0.0
    %1726 = vmatpush1.msra.mxu0 %v71
    %1727 = vmatprep.subr.mxu0 0.0
    %1728 = vmatpush1.msra.mxu0 %v70
    %1729 = vmatprep.subr.mxu0 0.0
    %1730 = vmatpush1.msra.mxu0 %v69
    %1731 = vmatprep.subr.mxu0 0.0
    %1732 = vmatpush1.msra.mxu0 %v68
    %1733 = vmatprep.subr.mxu0 0.0
    %1734 = vmatpush1.msra.mxu0 %v67
    %1735 = vmatprep.subr.mxu0 0.0
    %1736 = vmatpush1.msra.mxu0 %v66
    %1737 = vmatprep.subr.mxu0 0.0
    %1738 = vmatpush1.msra.mxu0 %v65
    %1739 = vmatprep.subr.mxu0 0.0
    %1740 = vmatpush1.msra.mxu0 %v64
    %1741 = vmatprep.subr.mxu0 0.0
    %1742 = vmatpush1.msra.mxu0 %v63
    %1743 = vmatprep.subr.mxu0 0.0
    %1744 = vmatpush1.msra.mxu0 %v62
    %1745 = vmatprep.subr.mxu0 0.0
    %1746 = vmatpush1.msra.mxu0 %v61
    %1747 = vmatprep.subr.mxu0 0.0
    %1748 = vmatpush2.msra.mxu0 0.0
    %1749 = vmatprep.subr.mxu0 0.0
    %1750 = vmatpush2.msra.mxu0 0.0
    %1751 = vmatprep.subr.mxu0 0.0
    %1752 = vmatpush2.msra.mxu0 0.0
    %1753 = vmatprep.subr.mxu0 0.0
    %1754 = vmatpush2.msra.mxu0 0.0
    %1755 = vmatprep.subr.mxu0 0.0
    %1756 = vmatpush2.msra.mxu0 0.0
    %1757 = vmatprep.subr.mxu0 0.0
    %1758 = vmatpush2.msra.mxu0 0.0
    %1759 = vmatprep.subr.mxu0 0.0
    %1760 = vmatpush2.msra.mxu0 0.0
    %1761 = vmatprep.subr.mxu0 0.0
    %1762 = vmatpush2.msra.mxu0 0.0
    %1763 = vmatprep.subr.mxu0 0.0
    %1764 = vmatpush2.msra.mxu0 0.0
    %1765 = vmatprep.subr.mxu0 0.0
    %1766 = vmatpush2.msra.mxu0 0.0
    %1767 = vmatprep.subr.mxu0 0.0
    %1768 = vmatpush2.msra.mxu0 0.0
    %1769 = vmatprep.subr.mxu0 0.0
    %1770 = vmatpush2.msra.mxu0 0.0
    %1771 = vmatprep.subr.mxu0 0.0
    %1772 = vmatpush2.msra.mxu0 0.0
    %1773 = vmatprep.subr.mxu0 0.0
    %1774 = vmatpush2.msra.mxu0 0.0
    %1775 = vmatprep.subr.mxu0 0.0
    %1776 = vmatpush2.msra.mxu0 0.0
    %1777 = vmatprep.subr.mxu0 0.0
    %1778 = vmatpush2.msra.mxu0 0.0
    %1779 = vmatprep.mubr.f32.mxu0 0.0
    %1780 = vmatmul.mubr.f32.gmra.mxu0 %v1714
    %v1781 = vpop.f32.mrf.mxu0
    %v1782 = vadd.f32 %v98, %v1781
    %v1783 = vpop.f32.mrf.mxu0
    %1784 = vdwg.mxu0
    %v1785 = vmax.f32 %v1782, 0.0
    %1786 = vmatprep.subr.mxu0 0.0
    %1787 = vmatpush1.msra.mxu0 %v92
    %1788 = vmatprep.subr.mxu0 0.0
    %1789 = vmatpush1.msra.mxu0 %v91
    %1790 = vmatprep.subr.mxu0 0.0
    %1791 = vmatpush1.msra.mxu0 %v90
    %1792 = vmatprep.subr.mxu0 0.0
    %1793 = vmatpush1.msra.mxu0 %v89
    %1794 = vmatprep.subr.mxu0 0.0
    %1795 = vmatpush1.msra.mxu0 %v88
    %1796 = vmatprep.subr.mxu0 0.0
    %1797 = vmatpush1.msra.mxu0 %v87
    %1798 = vmatprep.subr.mxu0 0.0
    %1799 = vmatpush1.msra.mxu0 %v86
    %1800 = vmatprep.subr.mxu0 0.0
    %1801 = vmatpush1.msra.mxu0 %v85
    %1802 = vmatprep.subr.mxu0 0.0
    %1803 = vmatpush1.msra.mxu0 %v84
    %1804 = vmatprep.subr.mxu0 0.0
    %1805 = vmatpush1.msra.mxu0 %v83
    %1806 = vmatprep.subr.mxu0 0.0
    %1807 = vmatpush1.msra.mxu0 %v82
    %1808 = vmatprep.subr.mxu0 0.0
    %1809 = vmatpush1.msra.mxu0 %v81
    %1810 = vmatprep.subr.mxu0 0.0
    %1811 = vmatpush1.msra.mxu0 %v80
    %1812 = vmatprep.subr.mxu0 0.0
    %1813 = vmatpush1.msra.mxu0 %v79
    %1814 = vmatprep.subr.mxu0 0.0
    %1815 = vmatpush1.msra.mxu0 %v78
    %1816 = vmatprep.subr.mxu0 0.0
    %1817 = vmatpush1.msra.mxu0 %v77
    %1818 = vmatprep.subr.mxu0 0.0
    %1819 = vmatpush2.msra.mxu0 0.0
    %1820 = vmatprep.subr.mxu0 0.0
    %1821 = vmatpush2.msra.mxu0 0.0
    %1822 = vmatprep.subr.mxu0 0.0
    %1823 = vmatpush2.msra.mxu0 0.0
    %1824 = vmatprep.subr.mxu0 0.0
    %1825 = vmatpush2.msra.mxu0 0.0
    %1826 = vmatprep.subr.mxu0 0.0
    %1827 = vmatpush2.msra.mxu0 0.0
    %1828 = vmatprep.subr.mxu0 0.0
    %1829 = vmatpush2.msra.mxu0 0.0
    %1830 = vmatprep.subr.mxu0 0.0
    %1831 = vmatpush2.msra.mxu0 0.0
    %1832 = vmatprep.subr.mxu0 0.0
    %1833 = vmatpush2.msra.mxu0 0.0
    %1834 = vmatprep.subr.mxu0 0.0
    %1835 = vmatpush2.msra.mxu0 0.0
    %1836 = vmatprep.subr.mxu0 0.0
    %1837 = vmatpush2.msra.mxu0 0.0
    %1838 = vmatprep.subr.mxu0 0.0
    %1839 = vmatpush2.msra.mxu0 0.0
    %1840 = vmatprep.subr.mxu0 0.0
    %1841 = vmatpush2.msra.mxu0 0.0
    %1842 = vmatprep.subr.mxu0 0.0
    %1843 = vmatpush2.msra.mxu0 0.0
    %1844 = vmatprep.subr.mxu0 0.0
    %1845 = vmatpush2.msra.mxu0 0.0
    %1846 = vmatprep.subr.mxu0 0.0
    %1847 = vmatpush2.msra.mxu0 0.0
    %1848 = vmatprep.subr.mxu0 0.0
    %1849 = vmatpush2.msra.mxu0 0.0
    %1850 = vmatprep.mubr.f32.mxu0 0.0
    %1851 = vmatmul.mubr.f32.gmra.mxu0 %v1785
    %v1852 = vpop.f32.mrf.mxu0
    %v1853 = vadd.f32 %v105, %v1852
    %v1854 = vpop.f32.mrf.mxu0
    %1855 = vdwg.mxu0
    %1856 = vst [vmem:[#allocation8] sm:$0xff] %v1853
    // Predicated region
    $region34: #{tpu_custom_call.1} parent=1 // pred_check
      _
    $region35: #{tpu_custom_call.1} parent=1 // pred_check_branch
      %1858 = sbr.rel (0) target = $region37
    $region36: #{tpu_custom_call.1} parent=1 // pred_region
      %s1860 = ssub.s32 128, 128
      %1861 = vsyncadd [#allocation4], %s1860
      %s1863 = sshll.u32 [#allocation8], 4
      %s1864 = int_to_ptr.vmem [resolvable:$true] %s1863
      %1866 = dma.vmem_to_hbm [thread:$0]  %s1864, 128, %s5, [#allocation4]
    $region37: #{tpu_custom_call.1} parent=1 // pred_fallthru
      _
    // Predicated region
    $region38: #{tpu_custom_call.1} parent=1 // pred_check
      _
    $region39: #{tpu_custom_call.1} parent=1 // pred_check_branch
      %1868 = sbr.rel (0) target = $region41
    $region40: #{tpu_custom_call.1} parent=1 // pred_region
      %1869 = dma.done [#allocation4], 128
    $region41: #{tpu_custom_call.1} parent=1 // pred_fallthru
      _
    %1870 = vsyncpa [#allocation3], 1
    %1871 = vsyncpa [#allocation6], 1
    %1872 = vsyncpa [#allocation4], 1

</llo_original>
